<compile_context>
chip_gen: v5e
topology: v5e:2x2
jax: 0.10.0
libtpu: 0.0.40
codegen_flags: <defaults>
</compile_context>

<pallas_src>
import functools

import jax
import jax.numpy as jnp
from jax.experimental import pallas as pl
from jax.experimental.pallas import tpu as pltpu


_LANE = 128
_TIME_CHUNK = 8                      # LSTM time steps per recurrent grid step
_LOGITS_DTYPE = jnp.float32          # switch to jnp.bfloat16 if downstream loss allows


def _derive_vmem_limit():
    """Generation-aware scoped-VMEM limit: ~3/4 of physical VMEM, capped at 100 MiB."""
    try:
        cap = int(pltpu.get_tpu_info().vmem_capacity_bytes)
    except Exception:
        cap = 64 * 1024 * 1024       # conservative fallback (v7x physical size)
    return max(32 * 1024 * 1024, min(cap * 3 // 4, 100 * 1024 * 1024))


_VMEM_LIMIT = _derive_vmem_limit()


def _round_up(x, m):
    return (x + m - 1) // m * m


def _pick_tile(dim, candidates):
    for c in candidates:
        if dim % c == 0:
            return c
    return dim                       # full-dim block is always legal


# ------------------- (M,K) x (K,N) + bias matmul, N-outer grid ---------------------
# N is the OUTER grid axis, so the (K, tn) weight block index is constant across the
# inner M loop and each weight tile is DMA'd from HBM exactly once; the small
# activation matrix is the re-fetched operand.  (Performance review item 1.)

def _matmul_bias_kernel(x_ref, w_ref, b_ref, o_ref):
    o_ref[...] = (
        jnp.dot(x_ref[...], w_ref[...], preferred_element_type=jnp.float32)
        + b_ref[...]
    ).astype(o_ref.dtype)


def _matmul_bias(x, w, b, out_dtype=jnp.float32):
    """x:(M,K) bf16, w:(K,N) bf16, b:(1,N) f32 -> (M,N) out_dtype.  N multiple of 128."""
    M, K = x.shape
    _, N = w.shape
    tm = _pick_tile(M, (512, 256, 128, 64, 32, 16, 8))
    tn = _pick_tile(N, (1024, 512, 256, 128))
    # TODO(synk): tile K with an 'arbitrary' axis + f32 accumulator scratch if E/Hp
    # ever grow large enough to stress VMEM.
    return pl.pallas_call(
        _matmul_bias_kernel,
        out_shape=jax.ShapeDtypeStruct((M, N), out_dtype),
        grid_spec=pltpu.PrefetchScalarGridSpec(
            num_scalar_prefetch=0,
            grid=(N // tn, M // tm),                      # N outer, M inner
            in_specs=[
                pl.BlockSpec((tm, K), lambda j, i: (i, 0)),
                pl.BlockSpec((K, tn), lambda j, i: (0, j)),   # constant over inner M
                pl.BlockSpec((1, tn), lambda j, i: (0, j)),
            ],
            out_specs=pl.BlockSpec((tm, tn), lambda j, i: (i, j)),
        ),
        compiler_params=pltpu.CompilerParams(
            dimension_semantics=("parallel", "parallel"),
            vmem_limit_bytes=_VMEM_LIMIT,
        ),
    )(x, w, b)


# ------------------------------ recurrent LSTM kernel ------------------------------

def _lstm_chunk_kernel(xg_ref, whh_ref, hout_ref, h_sc, c_sc):
    """One grid step == Tt LSTM time steps for one batch slice.

    xg_ref  : (Bb, Tt, 4Hp) bf16  precomputed x_t @ W_ih^T + (b_ih + b_hh), gate-blocked
    whh_ref : (Hp, 4Hp)     bf16  recurrent weight W_hh^T (gate order i, f, g, o)
    hout_ref: (Bb, Tt, Hp)  bf16  hidden states for this chunk (batch-major)
    h_sc    : (Bb, Hp)      bf16  hidden state carried across time chunks
    c_sc    : (Bb, Hp)      f32   cell state carried across time chunks
    """
    @pl.when(pl.program_id(1) == 0)
    def _():
        h_sc[...] = jnp.zeros_like(h_sc)
        c_sc[...] = jnp.zeros_like(c_sc)

    hp = whh_ref.shape[0]
    tt_steps = xg_ref.shape[1]
    w = whh_ref[...]                      # hoisted; tiny, reused every step
    h_bf = h_sc[...]                      # (Bb, Hp) bf16
    c = c_sc[...]                         # (Bb, Hp) f32

    # Static unrolled loop over the chunk (Tt is a compile-time constant).
    for tt in range(tt_steps):
        gates = xg_ref[:, tt, :].astype(jnp.float32) + jnp.dot(
            h_bf, w, preferred_element_type=jnp.float32)      # (Bb, 4Hp), lane-aligned
        i_g = jax.nn.sigmoid(gates[:, 0 * hp:1 * hp])
        f_g = jax.nn.sigmoid(gates[:, 1 * hp:2 * hp])
        g_g = jnp.tanh(gates[:, 2 * hp:3 * hp])
        o_g = jax.nn.sigmoid(gates[:, 3 * hp:4 * hp])
        c = f_g * c + i_g * g_g
        h_bf = (o_g * jnp.tanh(c)).astype(jnp.bfloat16)       # single cast per step
        hout_ref[:, tt, :] = h_bf

    h_sc[...] = h_bf
    c_sc[...] = c


# -------------------------------------- wrapper -------------------------------------

@functools.partial(jax.jit, static_argnames=("batch_split",))
def decoder_rnn_forward(features, captions, params, *, batch_split=1):
    """Mirrors DecoderRNN.forward(features, captions).

    features : (B, E) float
    captions : (B, L) int32 token ids
    returns  : (B, L, V) float32 logits
    batch_split : leading 'parallel' grid size for the recurrent kernel (2 on v7x to
                  use both TensorCores; 1 elsewhere).  Must divide B, else ignored.
    """
    emb_table = params["emb"]          # (V, E)
    w_ih = params["w_ih"]              # (4H, E)
    w_hh = params["w_hh"]              # (4H, H)
    b_ih = params["b_ih"]              # (4H,)
    b_hh = params["b_hh"]              # (4H,)
    w_fc = params["w_fc"]              # (V, H)
    b_fc = params["b_fc"]              # (V,)

    B, E = features.shape
    H = w_hh.shape[1]
    V = w_fc.shape[0]
    Hp = _round_up(H, _LANE)
    Vp = _round_up(V, _LANE)
    nb = batch_split if (batch_split >= 1 and B % batch_split == 0) else 1
    Bb = B // nb

    # --- glue (plain JAX): embedding gather + feature concat, pad time ---
    captions = captions[:, :-1]                                   # (B, L-1)
    captions_emb = jnp.take(emb_table, captions, axis=0)          # (B, L-1, E)
    feat = features.astype(jnp.float32)[:, None, :]               # (B, 1, E)
    x = jnp.concatenate([feat, captions_emb.astype(jnp.float32)], axis=1)  # (B, T, E)
    T = x.shape[1]
    Tt = _TIME_CHUNK
    Tp = _round_up(T, Tt)
    x = jnp.pad(x, ((0, 0), (0, Tp - T), (0, 0)))                 # (B, Tp, E) batch-major
    x_flat = x.reshape(B * Tp, E)                                 # free (contiguous)

    # --- padded / transposed weights (gate-blocked padding H -> Hp, zeros) ---
    def gate_pad(w_mat, in_dim, in_pad):
        w4 = w_mat.reshape(4, H, in_dim)
        w4 = jnp.pad(w4, ((0, 0), (0, Hp - H), (0, in_pad - in_dim)))
        return jnp.transpose(w4.reshape(4 * Hp, in_pad))          # (in_pad, 4Hp)

    wih_t = gate_pad(w_ih, E, E).astype(jnp.bfloat16)             # (E, 4Hp)
    whh_t = gate_pad(w_hh, H, Hp).astype(jnp.bfloat16)            # (Hp, 4Hp)
    bias = jnp.pad((b_ih + b_hh).reshape(4, H), ((0, 0), (0, Hp - H)))
    bias = bias.reshape(1, 4 * Hp).astype(jnp.float32)            # (1, 4Hp)
    wfc_t = jnp.pad(jnp.transpose(w_fc),
                    ((0, Hp - H), (0, Vp - V))).astype(jnp.bfloat16)   # (Hp, Vp)
    bfc = jnp.pad(b_fc, (0, Vp - V)).reshape(1, Vp).astype(jnp.float32)

    # --- 1) input gate projection for ALL time steps: one big MXU matmul, bf16 out ---
    xg = _matmul_bias(x_flat.astype(jnp.bfloat16), wih_t, bias,
                      out_dtype=jnp.bfloat16)                     # (B*Tp, 4Hp) bf16
    xg = xg.reshape(B, Tp, 4 * Hp)

    # --- 2) sequential recurrence: Tt steps per grid step, batch split across cores ---
    h = pl.pallas_call(
        _lstm_chunk_kernel,
        out_shape=jax.ShapeDtypeStruct((B, Tp, Hp), jnp.bfloat16),
        grid_spec=pltpu.PrefetchScalarGridSpec(
            num_scalar_prefetch=0,
            grid=(nb, Tp // Tt),
            in_specs=[
                pl.BlockSpec((Bb, Tt, 4 * Hp), lambda b, t: (b, t, 0)),  # gate pre-acts
                pl.BlockSpec((Hp, 4 * Hp), lambda b, t: (0, 0)),         # W_hh^T (bf16)
            ],
            out_specs=pl.BlockSpec((Bb, Tt, Hp), lambda b, t: (b, t, 0)),
            scratch_shapes=[
                pltpu.VMEM((Bb, Hp), jnp.bfloat16),                      # h state (bf16)
                pltpu.VMEM((Bb, Hp), jnp.float32),                       # c state (f32)
            ],
        ),
        compiler_params=pltpu.CompilerParams(
            dimension_semantics=("parallel", "arbitrary"),    # batch parallel, time serial
            vmem_limit_bytes=_VMEM_LIMIT,
        ),
    )(xg, whh_t)                                              # (B, Tp, Hp) batch-major

    # --- 3) output FC: one big (B*T, Hp) x (Hp, Vp) matmul, W_fc streamed once ---
    if Tp != T:
        h = h[:, :T, :]                # slice padded time off the SMALL bf16 tensor
    h_flat = h.reshape(B * T, Hp)
    logits = _matmul_bias(h_flat, wfc_t, bfc, out_dtype=_LOGITS_DTYPE)   # (B*T, Vp)
    logits = logits.reshape(B, T, Vp)
    if Vp != V:
        logits = logits[:, :, :V]      # no-op when vocab is already a multiple of 128
    return logits


# ------------------------------- pure-JAX reference ---------------------------------

def _reference_forward(features, captions, params):
    """Pure-f32 JAX reference of the same forward pass."""
    emb_table = params["emb"]
    w_ih, w_hh = params["w_ih"], params["w_hh"]
    b_ih, b_hh = params["b_ih"], params["b_hh"]
    w_fc, b_fc = params["w_fc"], params["b_fc"]
    H = w_hh.shape[1]

    captions = captions[:, :-1]
    captions_emb = jnp.take(emb_table, captions, axis=0)
    feat = features.astype(jnp.float32)[:, None, :]
    concat = jnp.concatenate([feat, captions_emb.astype(jnp.float32)], axis=1)
    B = concat.shape[0]

    def step(carry, x_t):
        h, c = carry
        gates = x_t @ w_ih.T + h @ w_hh.T + b_ih + b_hh
        i = jax.nn.sigmoid(gates[:, 0 * H:1 * H])
        f = jax.nn.sigmoid(gates[:, 1 * H:2 * H])
        g = jnp.tanh(gates[:, 2 * H:3 * H])
        o = jax.nn.sigmoid(gates[:, 3 * H:4 * H])
        c = f * c + i * g
        h = o * jnp.tanh(c)
        return (h, c), h

    h0 = jnp.zeros((B, H), jnp.float32)
    c0 = jnp.zeros((B, H), jnp.float32)
    _, hs = jax.lax.scan(step, (h0, c0), jnp.transpose(concat, (1, 0, 2)))
    hs = jnp.transpose(hs, (1, 0, 2))
    return hs @ w_fc.T + b_fc


def init_params(key, embed_size, hidden_size, vocab_size):
    ks = jax.random.split(key, 7)
    s = 0.1
    return {
        "emb":  s * jax.random.normal(ks[0], (vocab_size, embed_size), jnp.float32),
        "w_ih": s * jax.random.normal(ks[1], (4 * hidden_size, embed_size), jnp.float32),
        "w_hh": s * jax.random.normal(ks[2], (4 * hidden_size, hidden_size), jnp.float32),
        "b_ih": s * jax.random.normal(ks[3], (4 * hidden_size,), jnp.float32),
        "b_hh": s * jax.random.normal(ks[4], (4 * hidden_size,), jnp.float32),
        "w_fc": s * jax.random.normal(ks[5], (vocab_size, hidden_size), jnp.float32),
        "b_fc": s * jax.random.normal(ks[6], (vocab_size,), jnp.float32),
    }


if __name__ == "__main__":
    EMBED, HIDDEN, VOCAB = 32, 32, 48
    B, L = 2, 8   # LSTM sequence length T = 1 + (L-1) = 8

    key = jax.random.PRNGKey(0)
    kp, kf, kc = jax.random.split(key, 3)
    params = init_params(kp, EMBED, HIDDEN, VOCAB)
    features = jax.random.normal(kf, (B, EMBED), jnp.float32)
    captions = jax.random.randint(kc, (B, L), 0, VOCAB, dtype=jnp.int32)

    # batch_split=2 exercises the megacore-friendly batch-parallel recurrence path
    # (serialized but correct on single-core chips).
    out = decoder_rnn_forward(features, captions, params, batch_split=2)
    out = jax.block_until_ready(out)

    ref = _reference_forward(features, captions, params)
    assert out.shape == (B, L, VOCAB), out.shape
    # bf16 MXU operands + bf16 gate pre-activations vs f32 reference -> modest tolerance.
    assert jnp.allclose(out, ref, atol=3e-2, rtol=3e-2), float(jnp.max(jnp.abs(out - ref)))

    print("KERNEL_OK")
</pallas_src>

<mosaic_0001>
module attributes {stable_mosaic.version = 11 : i64} {
  func.func @_matmul_bias_kernel(%arg0: i32, %arg1: i32, %arg2: memref<16x32xbf16, #tpu.memory_space<vmem>>, %arg3: memref<32x512xbf16, #tpu.memory_space<vmem>>, %arg4: memref<1x512xf32, #tpu.memory_space<vmem>>, %arg5: memref<16x512xbf16, #tpu.memory_space<vmem>>) attributes {dimension_semantics = [#tpu.dimension_semantics<parallel>, #tpu.dimension_semantics<parallel>], iteration_bounds = array<i64: 1, 1>, scalar_prefetch = 0 : i64, scratch_operands = 0 : i64, tpu.core_type = #tpu.core_type<tc>, window_params = [{transform_indices = @transform_0, window_bounds = array<i64: 16, 32>}, {transform_indices = @transform_1, window_bounds = array<i64: 32, 512>}, {transform_indices = @transform_2, window_bounds = array<i64: 1, 512>}, {transform_indices = @transform_3, window_bounds = array<i64: 16, 512>}]} {
    %c0 = arith.constant 0 : index
    %c0_0 = arith.constant 0 : index
    %0 = vector.load %arg2[%c0, %c0_0] : memref<16x32xbf16, #tpu.memory_space<vmem>>, vector<16x32xbf16>
    %c0_1 = arith.constant 0 : index
    %c0_2 = arith.constant 0 : index
    %1 = vector.load %arg3[%c0_1, %c0_2] : memref<32x512xbf16, #tpu.memory_space<vmem>>, vector<32x512xbf16>
    %cst = arith.constant dense<0.000000e+00> : vector<16x512xf32>
    %2 = tpu.matmul %0, %1, %cst {dimension_numbers = #tpu.dot_dimension_numbers<[1], [0], [0], [1], [0, 0, 1, 1], [], []>} : vector<16x32xbf16>, vector<32x512xbf16>, vector<16x512xf32> -> vector<16x512xf32>
    %c0_3 = arith.constant 0 : index
    %c0_4 = arith.constant 0 : index
    %3 = vector.load %arg4[%c0_3, %c0_4] : memref<1x512xf32, #tpu.memory_space<vmem>>, vector<1x512xf32>
    %4 = vector.broadcast %3 : vector<1x512xf32> to vector<16x512xf32>
    %5 = arith.addf %2, %4 : vector<16x512xf32>
    %6 = arith.truncf %5 : vector<16x512xf32> to vector<16x512xbf16>
    %c0_5 = arith.constant 0 : index
    %c0_6 = arith.constant 0 : index
    %7 = vector.load %arg5[%c0_5, %c0_6] : memref<16x512xbf16, #tpu.memory_space<vmem>>, vector<16x512xbf16>
    tpu.vector_store %arg5[%c0_5, %c0_6], %6 {strides = array<i32>} : memref<16x512xbf16, #tpu.memory_space<vmem>>, vector<16x512xbf16>,
    return
  }
  func.func @transform_0(%arg0: i32, %arg1: i32) -> (i32, i32) {
    %c0_i32 = arith.constant 0 : i32
    %c0_i32_0 = arith.constant 0 : i32
    return %arg1, %c0_i32 : i32, i32
  }
  func.func @transform_1(%arg0: i32, %arg1: i32) -> (i32, i32) {
    %c0_i32 = arith.constant 0 : i32
    %c0_i32_0 = arith.constant 0 : i32
    return %c0_i32, %arg0 : i32, i32
  }
  func.func @transform_2(%arg0: i32, %arg1: i32) -> (i32, i32) {
    %c0_i32 = arith.constant 0 : i32
    %c0_i32_0 = arith.constant 0 : i32
    return %c0_i32, %arg0 : i32, i32
  }
  func.func @transform_3(%arg0: i32, %arg1: i32) -> (i32, i32) {
    %c0_i32 = arith.constant 0 : i32
    return %arg1, %arg0 : i32, i32
  }
}

module attributes {stable_mosaic.version = 11 : i64} {
  func.func @_lstm_chunk_kernel(%arg0: i32, %arg1: i32, %arg2: memref<1x8x512xbf16, #tpu.memory_space<vmem>>, %arg3: memref<128x512xbf16, #tpu.memory_space<vmem>>, %arg4: memref<1x8x128xbf16, #tpu.memory_space<vmem>>, %arg5: memref<1x128xbf16, #tpu.memory_space<vmem>>, %arg6: memref<1x128xf32, #tpu.memory_space<vmem>>) attributes {dimension_semantics = [#tpu.dimension_semantics<parallel>, #tpu.dimension_semantics<arbitrary>], iteration_bounds = array<i64: 2, 1>, scalar_prefetch = 0 : i64, scratch_operands = 2 : i64, tpu.core_type = #tpu.core_type<tc>, window_params = [{transform_indices = @transform_0, window_bounds = array<i64: 1, 8, 512>}, {pipeline_mode = #tpu.pipeline_mode<synchronous>, transform_indices = @transform_1, window_bounds = array<i64: 128, 512>}, {transform_indices = @transform_2, window_bounds = array<i64: 1, 8, 128>}]} {
    %c0_i32 = arith.constant 0 : i32
    %0 = arith.cmpi eq, %arg1, %c0_i32 : i32
    %1 = arith.extui %0 : i1 to i32
    %c0_i32_0 = arith.constant 0 : i32
    %2 = arith.cmpi ne, %1, %c0_i32_0 : i32
    scf.if %2 {
      %cst_82 = arith.constant 0.000000e+00 : bf16
      %280 = vector.broadcast %cst_82 : bf16 to vector<1x128xbf16>
      %c0_83 = arith.constant 0 : index
      %c0_84 = arith.constant 0 : index
      %281 = vector.load %arg5[%c0_83, %c0_84] : memref<1x128xbf16, #tpu.memory_space<vmem>>, vector<1x128xbf16>
      tpu.vector_store %arg5[%c0_83, %c0_84], %280 {strides = array<i32>} : memref<1x128xbf16, #tpu.memory_space<vmem>>, vector<1x128xbf16>,
      %cst_85 = arith.constant 0.000000e+00 : f32
      %282 = vector.broadcast %cst_85 : f32 to vector<1x128xf32>
      %c0_86 = arith.constant 0 : index
      %c0_87 = arith.constant 0 : index
      %283 = vector.load %arg6[%c0_86, %c0_87] : memref<1x128xf32, #tpu.memory_space<vmem>>, vector<1x128xf32>
      tpu.vector_store %arg6[%c0_86, %c0_87], %282 {strides = array<i32>} : memref<1x128xf32, #tpu.memory_space<vmem>>, vector<1x128xf32>,
    } else {
    }
    %c0 = arith.constant 0 : index
    %c0_1 = arith.constant 0 : index
    %3 = vector.load %arg3[%c0, %c0_1] : memref<128x512xbf16, #tpu.memory_space<vmem>>, vector<128x512xbf16>
    %c0_2 = arith.constant 0 : index
    %c0_3 = arith.constant 0 : index
    %4 = vector.load %arg5[%c0_2, %c0_3] : memref<1x128xbf16, #tpu.memory_space<vmem>>, vector<1x128xbf16>
    %c0_4 = arith.constant 0 : index
    %c0_5 = arith.constant 0 : index
    %5 = vector.load %arg6[%c0_4, %c0_5] : memref<1x128xf32, #tpu.memory_space<vmem>>, vector<1x128xf32>
    %c0_6 = arith.constant 0 : index
    %c0_7 = arith.constant 0 : index
    %c0_8 = arith.constant 0 : index
    %6 = vector.load %arg2[%c0_6, %c0_7, %c0_8] : memref<1x8x512xbf16, #tpu.memory_space<vmem>>, vector<1x1x512xbf16>
    %7 = vector.shape_cast %6 : vector<1x1x512xbf16> to vector<1x512xbf16>
    %8 = arith.extf %7 : vector<1x512xbf16> to vector<1x512xf32>
    %cst = arith.constant dense<0.000000e+00> : vector<1x512xf32>
    %9 = tpu.matmul %4, %3, %cst {dimension_numbers = #tpu.dot_dimension_numbers<[1], [0], [0], [1], [0, 0, 1, 1], [], []>} : vector<1x128xbf16>, vector<128x512xbf16>, vector<1x512xf32> -> vector<1x512xf32>
    %10 = arith.addf %8, %9 : vector<1x512xf32>
    %11 = vector.extract_strided_slice %10 {offsets = [0, 0], sizes = [1, 128], strides = [1, 1]} : vector<1x512xf32> to vector<1x128xf32>
    %12 = arith.negf %11 : vector<1x128xf32>
    %13 = math.exp %12 : vector<1x128xf32>
    %cst_9 = arith.constant 1.000000e+00 : f32
    %14 = vector.broadcast %cst_9 : f32 to vector<1x128xf32>
    %15 = arith.addf %14, %13 : vector<1x128xf32>
    %16 = arith.divf %14, %15 : vector<1x128xf32>
    %17 = vector.extract_strided_slice %10 {offsets = [0, 128], sizes = [1, 128], strides = [1, 1]} : vector<1x512xf32> to vector<1x128xf32>
    %18 = arith.negf %17 : vector<1x128xf32>
    %19 = math.exp %18 : vector<1x128xf32>
    %cst_10 = arith.constant 1.000000e+00 : f32
    %20 = vector.broadcast %cst_10 : f32 to vector<1x128xf32>
    %21 = arith.addf %20, %19 : vector<1x128xf32>
    %22 = arith.divf %20, %21 : vector<1x128xf32>
    %23 = vector.extract_strided_slice %10 {offsets = [0, 256], sizes = [1, 128], strides = [1, 1]} : vector<1x512xf32> to vector<1x128xf32>
    %24 = math.tanh %23 : vector<1x128xf32>
    %25 = vector.extract_strided_slice %10 {offsets = [0, 384], sizes = [1, 128], strides = [1, 1]} : vector<1x512xf32> to vector<1x128xf32>
    %26 = arith.negf %25 : vector<1x128xf32>
    %27 = math.exp %26 : vector<1x128xf32>
    %cst_11 = arith.constant 1.000000e+00 : f32
    %28 = vector.broadcast %cst_11 : f32 to vector<1x128xf32>
    %29 = arith.addf %28, %27 : vector<1x128xf32>
    %30 = arith.divf %28, %29 : vector<1x128xf32>
    %31 = arith.mulf %22, %5 : vector<1x128xf32>
    %32 = arith.mulf %16, %24 : vector<1x128xf32>
    %33 = arith.addf %31, %32 : vector<1x128xf32>
    %34 = math.tanh %33 : vector<1x128xf32>
    %35 = arith.mulf %30, %34 : vector<1x128xf32>
    %36 = arith.truncf %35 : vector<1x128xf32> to vector<1x128xbf16>
    %c0_12 = arith.constant 0 : index
    %c0_13 = arith.constant 0 : index
    %c0_14 = arith.constant 0 : index
    %37 = vector.load %arg4[%c0_12, %c0_13, %c0_14] : memref<1x8x128xbf16, #tpu.memory_space<vmem>>, vector<1x1x128xbf16>
    %38 = vector.shape_cast %37 : vector<1x1x128xbf16> to vector<1x128xbf16>
    %39 = vector.shape_cast %36 : vector<1x128xbf16> to vector<1x1x128xbf16>
    tpu.vector_store %arg4[%c0_12, %c0_13, %c0_14], %39 {strides = array<i32>} : memref<1x8x128xbf16, #tpu.memory_space<vmem>>, vector<1x1x128xbf16>,
    %c0_15 = arith.constant 0 : index
    %c1 = arith.constant 1 : index
    %c0_16 = arith.constant 0 : index
    %40 = vector.load %arg2[%c0_15, %c1, %c0_16] : memref<1x8x512xbf16, #tpu.memory_space<vmem>>, vector<1x1x512xbf16>
    %41 = vector.shape_cast %40 : vector<1x1x512xbf16> to vector<1x512xbf16>
    %42 = arith.extf %41 : vector<1x512xbf16> to vector<1x512xf32>
    %cst_17 = arith.constant dense<0.000000e+00> : vector<1x512xf32>
    %43 = tpu.matmul %36, %3, %cst_17 {dimension_numbers = #tpu.dot_dimension_numbers<[1], [0], [0], [1], [0, 0, 1, 1], [], []>} : vector<1x128xbf16>, vector<128x512xbf16>, vector<1x512xf32> -> vector<1x512xf32>
    %44 = arith.addf %42, %43 : vector<1x512xf32>
    %45 = vector.extract_strided_slice %44 {offsets = [0, 0], sizes = [1, 128], strides = [1, 1]} : vector<1x512xf32> to vector<1x128xf32>
    %46 = arith.negf %45 : vector<1x128xf32>
    %47 = math.exp %46 : vector<1x128xf32>
    %cst_18 = arith.constant 1.000000e+00 : f32
    %48 = vector.broadcast %cst_18 : f32 to vector<1x128xf32>
    %49 = arith.addf %48, %47 : vector<1x128xf32>
    %50 = arith.divf %48, %49 : vector<1x128xf32>
    %51 = vector.extract_strided_slice %44 {offsets = [0, 128], sizes = [1, 128], strides = [1, 1]} : vector<1x512xf32> to vector<1x128xf32>
    %52 = arith.negf %51 : vector<1x128xf32>
    %53 = math.exp %52 : vector<1x128xf32>
    %cst_19 = arith.constant 1.000000e+00 : f32
    %54 = vector.broadcast %cst_19 : f32 to vector<1x128xf32>
    %55 = arith.addf %54, %53 : vector<1x128xf32>
    %56 = arith.divf %54, %55 : vector<1x128xf32>
    %57 = vector.extract_strided_slice %44 {offsets = [0, 256], sizes = [1, 128], strides = [1, 1]} : vector<1x512xf32> to vector<1x128xf32>
    %58 = math.tanh %57 : vector<1x128xf32>
    %59 = vector.extract_strided_slice %44 {offsets = [0, 384], sizes = [1, 128], strides = [1, 1]} : vector<1x512xf32> to vector<1x128xf32>
    %60 = arith.negf %59 : vector<1x128xf32>
    %61 = math.exp %60 : vector<1x128xf32>
    %cst_20 = arith.constant 1.000000e+00 : f32
    %62 = vector.broadcast %cst_20 : f32 to vector<1x128xf32>
    %63 = arith.addf %62, %61 : vector<1x128xf32>
    %64 = arith.divf %62, %63 : vector<1x128xf32>
    %65 = arith.mulf %56, %33 : vector<1x128xf32>
    %66 = arith.mulf %50, %58 : vector<1x128xf32>
    %67 = arith.addf %65, %66 : vector<1x128xf32>
    %68 = math.tanh %67 : vector<1x128xf32>
    %69 = arith.mulf %64, %68 : vector<1x128xf32>
    %70 = arith.truncf %69 : vector<1x128xf32> to vector<1x128xbf16>
    %c0_21 = arith.constant 0 : index
    %c1_22 = arith.constant 1 : index
    %c0_23 = arith.constant 0 : index
    %71 = vector.load %arg4[%c0_21, %c1_22, %c0_23] : memref<1x8x128xbf16, #tpu.memory_space<vmem>>, vector<1x1x128xbf16>
    %72 = vector.shape_cast %71 : vector<1x1x128xbf16> to vector<1x128xbf16>
    %73 = vector.shape_cast %70 : vector<1x128xbf16> to vector<1x1x128xbf16>
    tpu.vector_store %arg4[%c0_21, %c1_22, %c0_23], %73 {strides = array<i32>} : memref<1x8x128xbf16, #tpu.memory_space<vmem>>, vector<1x1x128xbf16>,
    %c0_24 = arith.constant 0 : index
    %c2 = arith.constant 2 : index
    %c0_25 = arith.constant 0 : index
    %74 = vector.load %arg2[%c0_24, %c2, %c0_25] : memref<1x8x512xbf16, #tpu.memory_space<vmem>>, vector<1x1x512xbf16>
    %75 = vector.shape_cast %74 : vector<1x1x512xbf16> to vector<1x512xbf16>
    %76 = arith.extf %75 : vector<1x512xbf16> to vector<1x512xf32>
    %cst_26 = arith.constant dense<0.000000e+00> : vector<1x512xf32>
    %77 = tpu.matmul %70, %3, %cst_26 {dimension_numbers = #tpu.dot_dimension_numbers<[1], [0], [0], [1], [0, 0, 1, 1], [], []>} : vector<1x128xbf16>, vector<128x512xbf16>, vector<1x512xf32> -> vector<1x512xf32>
    %78 = arith.addf %76, %77 : vector<1x512xf32>
    %79 = vector.extract_strided_slice %78 {offsets = [0, 0], sizes = [1, 128], strides = [1, 1]} : vector<1x512xf32> to vector<1x128xf32>
    %80 = arith.negf %79 : vector<1x128xf32>
    %81 = math.exp %80 : vector<1x128xf32>
    %cst_27 = arith.constant 1.000000e+00 : f32
    %82 = vector.broadcast %cst_27 : f32 to vector<1x128xf32>
    %83 = arith.addf %82, %81 : vector<1x128xf32>
    %84 = arith.divf %82, %83 : vector<1x128xf32>
    %85 = vector.extract_strided_slice %78 {offsets = [0, 128], sizes = [1, 128], strides = [1, 1]} : vector<1x512xf32> to vector<1x128xf32>
    %86 = arith.negf %85 : vector<1x128xf32>
    %87 = math.exp %86 : vector<1x128xf32>
    %cst_28 = arith.constant 1.000000e+00 : f32
    %88 = vector.broadcast %cst_28 : f32 to vector<1x128xf32>
    %89 = arith.addf %88, %87 : vector<1x128xf32>
    %90 = arith.divf %88, %89 : vector<1x128xf32>
    %91 = vector.extract_strided_slice %78 {offsets = [0, 256], sizes = [1, 128], strides = [1, 1]} : vector<1x512xf32> to vector<1x128xf32>
    %92 = math.tanh %91 : vector<1x128xf32>
    %93 = vector.extract_strided_slice %78 {offsets = [0, 384], sizes = [1, 128], strides = [1, 1]} : vector<1x512xf32> to vector<1x128xf32>
    %94 = arith.negf %93 : vector<1x128xf32>
    %95 = math.exp %94 : vector<1x128xf32>
    %cst_29 = arith.constant 1.000000e+00 : f32
    %96 = vector.broadcast %cst_29 : f32 to vector<1x128xf32>
    %97 = arith.addf %96, %95 : vector<1x128xf32>
    %98 = arith.divf %96, %97 : vector<1x128xf32>
    %99 = arith.mulf %90, %67 : vector<1x128xf32>
    %100 = arith.mulf %84, %92 : vector<1x128xf32>
    %101 = arith.addf %99, %100 : vector<1x128xf32>
    %102 = math.tanh %101 : vector<1x128xf32>
    %103 = arith.mulf %98, %102 : vector<1x128xf32>
    %104 = arith.truncf %103 : vector<1x128xf32> to vector<1x128xbf16>
    %c0_30 = arith.constant 0 : index
    %c2_31 = arith.constant 2 : index
    %c0_32 = arith.constant 0 : index
    %105 = vector.load %arg4[%c0_30, %c2_31, %c0_32] : memref<1x8x128xbf16, #tpu.memory_space<vmem>>, vector<1x1x128xbf16>
    %106 = vector.shape_cast %105 : vector<1x1x128xbf16> to vector<1x128xbf16>
    %107 = vector.shape_cast %104 : vector<1x128xbf16> to vector<1x1x128xbf16>
    tpu.vector_store %arg4[%c0_30, %c2_31, %c0_32], %107 {strides = array<i32>} : memref<1x8x128xbf16, #tpu.memory_space<vmem>>, vector<1x1x128xbf16>,
    %c0_33 = arith.constant 0 : index
    %c3 = arith.constant 3 : index
    %c0_34 = arith.constant 0 : index
    %108 = vector.load %arg2[%c0_33, %c3, %c0_34] : memref<1x8x512xbf16, #tpu.memory_space<vmem>>, vector<1x1x512xbf16>
    %109 = vector.shape_cast %108 : vector<1x1x512xbf16> to vector<1x512xbf16>
    %110 = arith.extf %109 : vector<1x512xbf16> to vector<1x512xf32>
    %cst_35 = arith.constant dense<0.000000e+00> : vector<1x512xf32>
    %111 = tpu.matmul %104, %3, %cst_35 {dimension_numbers = #tpu.dot_dimension_numbers<[1], [0], [0], [1], [0, 0, 1, 1], [], []>} : vector<1x128xbf16>, vector<128x512xbf16>, vector<1x512xf32> -> vector<1x512xf32>
    %112 = arith.addf %110, %111 : vector<1x512xf32>
    %113 = vector.extract_strided_slice %112 {offsets = [0, 0], sizes = [1, 128], strides = [1, 1]} : vector<1x512xf32> to vector<1x128xf32>
    %114 = arith.negf %113 : vector<1x128xf32>
    %115 = math.exp %114 : vector<1x128xf32>
    %cst_36 = arith.constant 1.000000e+00 : f32
    %116 = vector.broadcast %cst_36 : f32 to vector<1x128xf32>
    %117 = arith.addf %116, %115 : vector<1x128xf32>
    %118 = arith.divf %116, %117 : vector<1x128xf32>
    %119 = vector.extract_strided_slice %112 {offsets = [0, 128], sizes = [1, 128], strides = [1, 1]} : vector<1x512xf32> to vector<1x128xf32>
    %120 = arith.negf %119 : vector<1x128xf32>
    %121 = math.exp %120 : vector<1x128xf32>
    %cst_37 = arith.constant 1.000000e+00 : f32
    %122 = vector.broadcast %cst_37 : f32 to vector<1x128xf32>
    %123 = arith.addf %122, %121 : vector<1x128xf32>
    %124 = arith.divf %122, %123 : vector<1x128xf32>
    %125 = vector.extract_strided_slice %112 {offsets = [0, 256], sizes = [1, 128], strides = [1, 1]} : vector<1x512xf32> to vector<1x128xf32>
    %126 = math.tanh %125 : vector<1x128xf32>
    %127 = vector.extract_strided_slice %112 {offsets = [0, 384], sizes = [1, 128], strides = [1, 1]} : vector<1x512xf32> to vector<1x128xf32>
    %128 = arith.negf %127 : vector<1x128xf32>
    %129 = math.exp %128 : vector<1x128xf32>
    %cst_38 = arith.constant 1.000000e+00 : f32
    %130 = vector.broadcast %cst_38 : f32 to vector<1x128xf32>
    %131 = arith.addf %130, %129 : vector<1x128xf32>
    %132 = arith.divf %130, %131 : vector<1x128xf32>
    %133 = arith.mulf %124, %101 : vector<1x128xf32>
    %134 = arith.mulf %118, %126 : vector<1x128xf32>
    %135 = arith.addf %133, %134 : vector<1x128xf32>
    %136 = math.tanh %135 : vector<1x128xf32>
    %137 = arith.mulf %132, %136 : vector<1x128xf32>
    %138 = arith.truncf %137 : vector<1x128xf32> to vector<1x128xbf16>
    %c0_39 = arith.constant 0 : index
    %c3_40 = arith.constant 3 : index
    %c0_41 = arith.constant 0 : index
    %139 = vector.load %arg4[%c0_39, %c3_40, %c0_41] : memref<1x8x128xbf16, #tpu.memory_space<vmem>>, vector<1x1x128xbf16>
    %140 = vector.shape_cast %139 : vector<1x1x128xbf16> to vector<1x128xbf16>
    %141 = vector.shape_cast %138 : vector<1x128xbf16> to vector<1x1x128xbf16>
    tpu.vector_store %arg4[%c0_39, %c3_40, %c0_41], %141 {strides = array<i32>} : memref<1x8x128xbf16, #tpu.memory_space<vmem>>, vector<1x1x128xbf16>,
    %c0_42 = arith.constant 0 : index
    %c4 = arith.constant 4 : index
    %c0_43 = arith.constant 0 : index
    %142 = vector.load %arg2[%c0_42, %c4, %c0_43] : memref<1x8x512xbf16, #tpu.memory_space<vmem>>, vector<1x1x512xbf16>
    %143 = vector.shape_cast %142 : vector<1x1x512xbf16> to vector<1x512xbf16>
    %144 = arith.extf %143 : vector<1x512xbf16> to vector<1x512xf32>
    %cst_44 = arith.constant dense<0.000000e+00> : vector<1x512xf32>
    %145 = tpu.matmul %138, %3, %cst_44 {dimension_numbers = #tpu.dot_dimension_numbers<[1], [0], [0], [1], [0, 0, 1, 1], [], []>} : vector<1x128xbf16>, vector<128x512xbf16>, vector<1x512xf32> -> vector<1x512xf32>
    %146 = arith.addf %144, %145 : vector<1x512xf32>
    %147 = vector.extract_strided_slice %146 {offsets = [0, 0], sizes = [1, 128], strides = [1, 1]} : vector<1x512xf32> to vector<1x128xf32>
    %148 = arith.negf %147 : vector<1x128xf32>
    %149 = math.exp %148 : vector<1x128xf32>
    %cst_45 = arith.constant 1.000000e+00 : f32
    %150 = vector.broadcast %cst_45 : f32 to vector<1x128xf32>
    %151 = arith.addf %150, %149 : vector<1x128xf32>
    %152 = arith.divf %150, %151 : vector<1x128xf32>
    %153 = vector.extract_strided_slice %146 {offsets = [0, 128], sizes = [1, 128], strides = [1, 1]} : vector<1x512xf32> to vector<1x128xf32>
    %154 = arith.negf %153 : vector<1x128xf32>
    %155 = math.exp %154 : vector<1x128xf32>
    %cst_46 = arith.constant 1.000000e+00 : f32
    %156 = vector.broadcast %cst_46 : f32 to vector<1x128xf32>
    %157 = arith.addf %156, %155 : vector<1x128xf32>
    %158 = arith.divf %156, %157 : vector<1x128xf32>
    %159 = vector.extract_strided_slice %146 {offsets = [0, 256], sizes = [1, 128], strides = [1, 1]} : vector<1x512xf32> to vector<1x128xf32>
    %160 = math.tanh %159 : vector<1x128xf32>
    %161 = vector.extract_strided_slice %146 {offsets = [0, 384], sizes = [1, 128], strides = [1, 1]} : vector<1x512xf32> to vector<1x128xf32>
    %162 = arith.negf %161 : vector<1x128xf32>
    %163 = math.exp %162 : vector<1x128xf32>
    %cst_47 = arith.constant 1.000000e+00 : f32
    %164 = vector.broadcast %cst_47 : f32 to vector<1x128xf32>
    %165 = arith.addf %164, %163 : vector<1x128xf32>
    %166 = arith.divf %164, %165 : vector<1x128xf32>
    %167 = arith.mulf %158, %135 : vector<1x128xf32>
    %168 = arith.mulf %152, %160 : vector<1x128xf32>
    %169 = arith.addf %167, %168 : vector<1x128xf32>
    %170 = math.tanh %169 : vector<1x128xf32>
    %171 = arith.mulf %166, %170 : vector<1x128xf32>
    %172 = arith.truncf %171 : vector<1x128xf32> to vector<1x128xbf16>
    %c0_48 = arith.constant 0 : index
    %c4_49 = arith.constant 4 : index
    %c0_50 = arith.constant 0 : index
    %173 = vector.load %arg4[%c0_48, %c4_49, %c0_50] : memref<1x8x128xbf16, #tpu.memory_space<vmem>>, vector<1x1x128xbf16>
    %174 = vector.shape_cast %173 : vector<1x1x128xbf16> to vector<1x128xbf16>
    %175 = vector.shape_cast %172 : vector<1x128xbf16> to vector<1x1x128xbf16>
    tpu.vector_store %arg4[%c0_48, %c4_49, %c0_50], %175 {strides = array<i32>} : memref<1x8x128xbf16, #tpu.memory_space<vmem>>, vector<1x1x128xbf16>,
    %c0_51 = arith.constant 0 : index
    %c5 = arith.constant 5 : index
    %c0_52 = arith.constant 0 : index
    %176 = vector.load %arg2[%c0_51, %c5, %c0_52] : memref<1x8x512xbf16, #tpu.memory_space<vmem>>, vector<1x1x512xbf16>
    %177 = vector.shape_cast %176 : vector<1x1x512xbf16> to vector<1x512xbf16>
    %178 = arith.extf %177 : vector<1x512xbf16> to vector<1x512xf32>
    %cst_53 = arith.constant dense<0.000000e+00> : vector<1x512xf32>
    %179 = tpu.matmul %172, %3, %cst_53 {dimension_numbers = #tpu.dot_dimension_numbers<[1], [0], [0], [1], [0, 0, 1, 1], [], []>} : vector<1x128xbf16>, vector<128x512xbf16>, vector<1x512xf32> -> vector<1x512xf32>
    %180 = arith.addf %178, %179 : vector<1x512xf32>
    %181 = vector.extract_strided_slice %180 {offsets = [0, 0], sizes = [1, 128], strides = [1, 1]} : vector<1x512xf32> to vector<1x128xf32>
    %182 = arith.negf %181 : vector<1x128xf32>
    %183 = math.exp %182 : vector<1x128xf32>
    %cst_54 = arith.constant 1.000000e+00 : f32
    %184 = vector.broadcast %cst_54 : f32 to vector<1x128xf32>
    %185 = arith.addf %184, %183 : vector<1x128xf32>
    %186 = arith.divf %184, %185 : vector<1x128xf32>
    %187 = vector.extract_strided_slice %180 {offsets = [0, 128], sizes = [1, 128], strides = [1, 1]} : vector<1x512xf32> to vector<1x128xf32>
    %188 = arith.negf %187 : vector<1x128xf32>
    %189 = math.exp %188 : vector<1x128xf32>
    %cst_55 = arith.constant 1.000000e+00 : f32
    %190 = vector.broadcast %cst_55 : f32 to vector<1x128xf32>
    %191 = arith.addf %190, %189 : vector<1x128xf32>
    %192 = arith.divf %190, %191 : vector<1x128xf32>
    %193 = vector.extract_strided_slice %180 {offsets = [0, 256], sizes = [1, 128], strides = [1, 1]} : vector<1x512xf32> to vector<1x128xf32>
    %194 = math.tanh %193 : vector<1x128xf32>
    %195 = vector.extract_strided_slice %180 {offsets = [0, 384], sizes = [1, 128], strides = [1, 1]} : vector<1x512xf32> to vector<1x128xf32>
    %196 = arith.negf %195 : vector<1x128xf32>
    %197 = math.exp %196 : vector<1x128xf32>
    %cst_56 = arith.constant 1.000000e+00 : f32
    %198 = vector.broadcast %cst_56 : f32 to vector<1x128xf32>
    %199 = arith.addf %198, %197 : vector<1x128xf32>
    %200 = arith.divf %198, %199 : vector<1x128xf32>
    %201 = arith.mulf %192, %169 : vector<1x128xf32>
    %202 = arith.mulf %186, %194 : vector<1x128xf32>
    %203 = arith.addf %201, %202 : vector<1x128xf32>
    %204 = math.tanh %203 : vector<1x128xf32>
    %205 = arith.mulf %200, %204 : vector<1x128xf32>
    %206 = arith.truncf %205 : vector<1x128xf32> to vector<1x128xbf16>
    %c0_57 = arith.constant 0 : index
    %c5_58 = arith.constant 5 : index
    %c0_59 = arith.constant 0 : index
    %207 = vector.load %arg4[%c0_57, %c5_58, %c0_59] : memref<1x8x128xbf16, #tpu.memory_space<vmem>>, vector<1x1x128xbf16>
    %208 = vector.shape_cast %207 : vector<1x1x128xbf16> to vector<1x128xbf16>
    %209 = vector.shape_cast %206 : vector<1x128xbf16> to vector<1x1x128xbf16>
    tpu.vector_store %arg4[%c0_57, %c5_58, %c0_59], %209 {strides = array<i32>} : memref<1x8x128xbf16, #tpu.memory_space<vmem>>, vector<1x1x128xbf16>,
    %c0_60 = arith.constant 0 : index
    %c6 = arith.constant 6 : index
    %c0_61 = arith.constant 0 : index
    %210 = vector.load %arg2[%c0_60, %c6, %c0_61] : memref<1x8x512xbf16, #tpu.memory_space<vmem>>, vector<1x1x512xbf16>
    %211 = vector.shape_cast %210 : vector<1x1x512xbf16> to vector<1x512xbf16>
    %212 = arith.extf %211 : vector<1x512xbf16> to vector<1x512xf32>
    %cst_62 = arith.constant dense<0.000000e+00> : vector<1x512xf32>
    %213 = tpu.matmul %206, %3, %cst_62 {dimension_numbers = #tpu.dot_dimension_numbers<[1], [0], [0], [1], [0, 0, 1, 1], [], []>} : vector<1x128xbf16>, vector<128x512xbf16>, vector<1x512xf32> -> vector<1x512xf32>
    %214 = arith.addf %212, %213 : vector<1x512xf32>
    %215 = vector.extract_strided_slice %214 {offsets = [0, 0], sizes = [1, 128], strides = [1, 1]} : vector<1x512xf32> to vector<1x128xf32>
    %216 = arith.negf %215 : vector<1x128xf32>
    %217 = math.exp %216 : vector<1x128xf32>
    %cst_63 = arith.constant 1.000000e+00 : f32
    %218 = vector.broadcast %cst_63 : f32 to vector<1x128xf32>
    %219 = arith.addf %218, %217 : vector<1x128xf32>
    %220 = arith.divf %218, %219 : vector<1x128xf32>
    %221 = vector.extract_strided_slice %214 {offsets = [0, 128], sizes = [1, 128], strides = [1, 1]} : vector<1x512xf32> to vector<1x128xf32>
    %222 = arith.negf %221 : vector<1x128xf32>
    %223 = math.exp %222 : vector<1x128xf32>
    %cst_64 = arith.constant 1.000000e+00 : f32
    %224 = vector.broadcast %cst_64 : f32 to vector<1x128xf32>
    %225 = arith.addf %224, %223 : vector<1x128xf32>
    %226 = arith.divf %224, %225 : vector<1x128xf32>
    %227 = vector.extract_strided_slice %214 {offsets = [0, 256], sizes = [1, 128], strides = [1, 1]} : vector<1x512xf32> to vector<1x128xf32>
    %228 = math.tanh %227 : vector<1x128xf32>
    %229 = vector.extract_strided_slice %214 {offsets = [0, 384], sizes = [1, 128], strides = [1, 1]} : vector<1x512xf32> to vector<1x128xf32>
    %230 = arith.negf %229 : vector<1x128xf32>
    %231 = math.exp %230 : vector<1x128xf32>
    %cst_65 = arith.constant 1.000000e+00 : f32
    %232 = vector.broadcast %cst_65 : f32 to vector<1x128xf32>
    %233 = arith.addf %232, %231 : vector<1x128xf32>
    %234 = arith.divf %232, %233 : vector<1x128xf32>
    %235 = arith.mulf %226, %203 : vector<1x128xf32>
    %236 = arith.mulf %220, %228 : vector<1x128xf32>
    %237 = arith.addf %235, %236 : vector<1x128xf32>
    %238 = math.tanh %237 : vector<1x128xf32>
    %239 = arith.mulf %234, %238 : vector<1x128xf32>
    %240 = arith.truncf %239 : vector<1x128xf32> to vector<1x128xbf16>
    %c0_66 = arith.constant 0 : index
    %c6_67 = arith.constant 6 : index
    %c0_68 = arith.constant 0 : index
    %241 = vector.load %arg4[%c0_66, %c6_67, %c0_68] : memref<1x8x128xbf16, #tpu.memory_space<vmem>>, vector<1x1x128xbf16>
    %242 = vector.shape_cast %241 : vector<1x1x128xbf16> to vector<1x128xbf16>
    %243 = vector.shape_cast %240 : vector<1x128xbf16> to vector<1x1x128xbf16>
    tpu.vector_store %arg4[%c0_66, %c6_67, %c0_68], %243 {strides = array<i32>} : memref<1x8x128xbf16, #tpu.memory_space<vmem>>, vector<1x1x128xbf16>,
    %c0_69 = arith.constant 0 : index
    %c7 = arith.constant 7 : index
    %c0_70 = arith.constant 0 : index
    %244 = vector.load %arg2[%c0_69, %c7, %c0_70] : memref<1x8x512xbf16, #tpu.memory_space<vmem>>, vector<1x1x512xbf16>
    %245 = vector.shape_cast %244 : vector<1x1x512xbf16> to vector<1x512xbf16>
    %246 = arith.extf %245 : vector<1x512xbf16> to vector<1x512xf32>
    %cst_71 = arith.constant dense<0.000000e+00> : vector<1x512xf32>
    %247 = tpu.matmul %240, %3, %cst_71 {dimension_numbers = #tpu.dot_dimension_numbers<[1], [0], [0], [1], [0, 0, 1, 1], [], []>} : vector<1x128xbf16>, vector<128x512xbf16>, vector<1x512xf32> -> vector<1x512xf32>
    %248 = arith.addf %246, %247 : vector<1x512xf32>
    %249 = vector.extract_strided_slice %248 {offsets = [0, 0], sizes = [1, 128], strides = [1, 1]} : vector<1x512xf32> to vector<1x128xf32>
    %250 = arith.negf %249 : vector<1x128xf32>
    %251 = math.exp %250 : vector<1x128xf32>
    %cst_72 = arith.constant 1.000000e+00 : f32
    %252 = vector.broadcast %cst_72 : f32 to vector<1x128xf32>
    %253 = arith.addf %252, %251 : vector<1x128xf32>
    %254 = arith.divf %252, %253 : vector<1x128xf32>
    %255 = vector.extract_strided_slice %248 {offsets = [0, 128], sizes = [1, 128], strides = [1, 1]} : vector<1x512xf32> to vector<1x128xf32>
    %256 = arith.negf %255 : vector<1x128xf32>
    %257 = math.exp %256 : vector<1x128xf32>
    %cst_73 = arith.constant 1.000000e+00 : f32
    %258 = vector.broadcast %cst_73 : f32 to vector<1x128xf32>
    %259 = arith.addf %258, %257 : vector<1x128xf32>
    %260 = arith.divf %258, %259 : vector<1x128xf32>
    %261 = vector.extract_strided_slice %248 {offsets = [0, 256], sizes = [1, 128], strides = [1, 1]} : vector<1x512xf32> to vector<1x128xf32>
    %262 = math.tanh %261 : vector<1x128xf32>
    %263 = vector.extract_strided_slice %248 {offsets = [0, 384], sizes = [1, 128], strides = [1, 1]} : vector<1x512xf32> to vector<1x128xf32>
    %264 = arith.negf %263 : vector<1x128xf32>
    %265 = math.exp %264 : vector<1x128xf32>
    %cst_74 = arith.constant 1.000000e+00 : f32
    %266 = vector.broadcast %cst_74 : f32 to vector<1x128xf32>
    %267 = arith.addf %266, %265 : vector<1x128xf32>
    %268 = arith.divf %266, %267 : vector<1x128xf32>
    %269 = arith.mulf %260, %237 : vector<1x128xf32>
    %270 = arith.mulf %254, %262 : vector<1x128xf32>
    %271 = arith.addf %269, %270 : vector<1x128xf32>
    %272 = math.tanh %271 : vector<1x128xf32>
    %273 = arith.mulf %268, %272 : vector<1x128xf32>
    %274 = arith.truncf %273 : vector<1x128xf32> to vector<1x128xbf16>
    %c0_75 = arith.constant 0 : index
    %c7_76 = arith.constant 7 : index
    %c0_77 = arith.constant 0 : index
    %275 = vector.load %arg4[%c0_75, %c7_76, %c0_77] : memref<1x8x128xbf16, #tpu.memory_space<vmem>>, vector<1x1x128xbf16>
    %276 = vector.shape_cast %275 : vector<1x1x128xbf16> to vector<1x128xbf16>
    %277 = vector.shape_cast %274 : vector<1x128xbf16> to vector<1x1x128xbf16>
    tpu.vector_store %arg4[%c0_75, %c7_76, %c0_77], %277 {strides = array<i32>} : memref<1x8x128xbf16, #tpu.memory_space<vmem>>, vector<1x1x128xbf16>,
    %c0_78 = arith.constant 0 : index
    %c0_79 = arith.constant 0 : index
    %278 = vector.load %arg5[%c0_78, %c0_79] : memref<1x128xbf16, #tpu.memory_space<vmem>>, vector<1x128xbf16>
    tpu.vector_store %arg5[%c0_78, %c0_79], %274 {strides = array<i32>} : memref<1x128xbf16, #tpu.memory_space<vmem>>, vector<1x128xbf16>,
    %c0_80 = arith.constant 0 : index
    %c0_81 = arith.constant 0 : index
    %279 = vector.load %arg6[%c0_80, %c0_81] : memref<1x128xf32, #tpu.memory_space<vmem>>, vector<1x128xf32>
    tpu.vector_store %arg6[%c0_80, %c0_81], %271 {strides = array<i32>} : memref<1x128xf32, #tpu.memory_space<vmem>>, vector<1x128xf32>,
    return
  }
  func.func @transform_0(%arg0: i32, %arg1: i32) -> (i32, i32, i32) {
    %c0_i32 = arith.constant 0 : i32
    %c0_i32_0 = arith.constant 0 : i32
    return %arg0, %arg1, %c0_i32 : i32, i32, i32
  }
  func.func @transform_1(%arg0: i32, %arg1: i32) -> (i32, i32) {
    %c0_i32 = arith.constant 0 : i32
    %c0_i32_0 = arith.constant 0 : i32
    %c0_i32_1 = arith.constant 0 : i32
    return %c0_i32, %c0_i32_0 : i32, i32
  }
  func.func @transform_2(%arg0: i32, %arg1: i32) -> (i32, i32, i32) {
    %c0_i32 = arith.constant 0 : i32
    %c0_i32_0 = arith.constant 0 : i32
    return %arg0, %arg1, %c0_i32 : i32, i32, i32
  }
}

module attributes {stable_mosaic.version = 11 : i64} {
  func.func @_matmul_bias_kernel(%arg0: i32, %arg1: i32, %arg2: memref<16x128xbf16, #tpu.memory_space<vmem>>, %arg3: memref<128x128xbf16, #tpu.memory_space<vmem>>, %arg4: memref<1x128xf32, #tpu.memory_space<vmem>>, %arg5: memref<16x128xf32, #tpu.memory_space<vmem>>) attributes {dimension_semantics = [#tpu.dimension_semantics<parallel>, #tpu.dimension_semantics<parallel>], iteration_bounds = array<i64: 1, 1>, scalar_prefetch = 0 : i64, scratch_operands = 0 : i64, tpu.core_type = #tpu.core_type<tc>, window_params = [{transform_indices = @transform_0, window_bounds = array<i64: 16, 128>}, {transform_indices = @transform_1, window_bounds = array<i64: 128, 128>}, {transform_indices = @transform_2, window_bounds = array<i64: 1, 128>}, {transform_indices = @transform_3, window_bounds = array<i64: 16, 128>}]} {
    %c0 = arith.constant 0 : index
    %c0_0 = arith.constant 0 : index
    %0 = vector.load %arg2[%c0, %c0_0] : memref<16x128xbf16, #tpu.memory_space<vmem>>, vector<16x128xbf16>
    %c0_1 = arith.constant 0 : index
    %c0_2 = arith.constant 0 : index
    %1 = vector.load %arg3[%c0_1, %c0_2] : memref<128x128xbf16, #tpu.memory_space<vmem>>, vector<128x128xbf16>
    %cst = arith.constant dense<0.000000e+00> : vector<16x128xf32>
    %2 = tpu.matmul %0, %1, %cst {dimension_numbers = #tpu.dot_dimension_numbers<[1], [0], [0], [1], [0, 0, 1, 1], [], []>} : vector<16x128xbf16>, vector<128x128xbf16>, vector<16x128xf32> -> vector<16x128xf32>
    %c0_3 = arith.constant 0 : index
    %c0_4 = arith.constant 0 : index
    %3 = vector.load %arg4[%c0_3, %c0_4] : memref<1x128xf32, #tpu.memory_space<vmem>>, vector<1x128xf32>
    %4 = vector.broadcast %3 : vector<1x128xf32> to vector<16x128xf32>
    %5 = arith.addf %2, %4 : vector<16x128xf32>
    %c0_5 = arith.constant 0 : index
    %c0_6 = arith.constant 0 : index
    %6 = vector.load %arg5[%c0_5, %c0_6] : memref<16x128xf32, #tpu.memory_space<vmem>>, vector<16x128xf32>
    tpu.vector_store %arg5[%c0_5, %c0_6], %5 {strides = array<i32>} : memref<16x128xf32, #tpu.memory_space<vmem>>, vector<16x128xf32>,
    return
  }
  func.func @transform_0(%arg0: i32, %arg1: i32) -> (i32, i32) {
    %c0_i32 = arith.constant 0 : i32
    %c0_i32_0 = arith.constant 0 : i32
    return %arg1, %c0_i32 : i32, i32
  }
  func.func @transform_1(%arg0: i32, %arg1: i32) -> (i32, i32) {
    %c0_i32 = arith.constant 0 : i32
    %c0_i32_0 = arith.constant 0 : i32
    return %c0_i32, %arg0 : i32, i32
  }
  func.func @transform_2(%arg0: i32, %arg1: i32) -> (i32, i32) {
    %c0_i32 = arith.constant 0 : i32
    %c0_i32_0 = arith.constant 0 : i32
    return %c0_i32, %arg0 : i32, i32
  }
  func.func @transform_3(%arg0: i32, %arg1: i32) -> (i32, i32) {
    %c0_i32 = arith.constant 0 : i32
    return %arg1, %arg0 : i32, i32
  }
}

</mosaic_0001>

<llo_original>
// kernel: decoder_rnn_forward.3
$region0: #{decoder_rnn_forward.3}
  #allocation0 [shape = 'u32[]', space=smem, size = 0x4, offset = 0x4, fixed_abs, tag = 'smem constant byte address 0x4 - core index']
  #allocation1 [shape = 'u32[72,128]{1,0:T(1,128)}', space=vmem, size = 0x9000, scoped, tag = 'internal scratch']
  %s0 = inlined_call_operand.vmem [shape: bf16[16,32], index: 0, kind: input, shape index: {}]
  %s1 = inlined_call_operand.vmem [shape: bf16[32,512], index: 1, kind: input, shape index: {}]
  %s2 = inlined_call_operand.vmem [shape: f32[1,512], index: 2, kind: input, shape index: {}]
  %s3 = inlined_call_operand.vmem [shape: bf16[16,512], index: 3, kind: output, shape index: {}]
  %s4 = sld [smem:[#allocation0]]
  $region22: #{decoder_rnn_forward.3} parent=0
    _
  %s6 = ssub.s32 1, %s4
  %s7 = scalar_select 0, %s6, %s4
  // Predicated region
  $region2: #{decoder_rnn_forward.3} parent=0 // pred_check
    _
  $region3: #{decoder_rnn_forward.3} parent=0 // pred_check_branch
    %9 = sbr.rel (0) target = $region5
  $region4: #{decoder_rnn_forward.3} parent=0 // pred_region
    _
  $region5: #{decoder_rnn_forward.3} parent=0 // pred_fallthru
    _
  // Predicated region
  $region6: #{decoder_rnn_forward.3} parent=0 // pred_check
    _
  $region7: #{decoder_rnn_forward.3} parent=0 // pred_check_branch
    %11 = sbr.rel (0) target = $region9
  $region8: #{decoder_rnn_forward.3} parent=0 // pred_region
    _
  $region9: #{decoder_rnn_forward.3} parent=0 // pred_fallthru
    _
  // Predicated region
  $region10: #{decoder_rnn_forward.3} parent=0 // pred_check
    _
  $region11: #{decoder_rnn_forward.3} parent=0 // pred_check_branch
    %13 = sbr.rel (0) target = $region13
  $region12: #{decoder_rnn_forward.3} parent=0 // pred_region
    _
  $region13: #{decoder_rnn_forward.3} parent=0 // pred_fallthru
    _
  %v15 = vld [vmem:[%s0] sm:$0xf]
  %v16 = vld [vmem:[%s0 + $0x4] sm:$0xf]
  %v17 = vld [vmem:[%s1] sm:$0xff]
  %v18 = vld [vmem:[%s1 + $0x8] sm:$0xff]
  %v19 = vld [vmem:[%s1 + $0x10] sm:$0xff]
  %v20 = vld [vmem:[%s1 + $0x18] sm:$0xff]
  %v21 = vld [vmem:[%s1 + $0x20] sm:$0xff]
  %v22 = vld [vmem:[%s1 + $0x28] sm:$0xff]
  %v23 = vld [vmem:[%s1 + $0x30] sm:$0xff]
  %v24 = vld [vmem:[%s1 + $0x38] sm:$0xff]
  %v25 = vld [vmem:[%s2] sm:$0xf]
  %v27 = vperm.slane %v25, 0
  %v28 = vperm.slane %v25, 1
  %v29 = vperm.slane %v25, 2
  %v30 = vperm.slane %v25, 3
  %v37 = vunpack.c.l.b16 %v15
  %v38 = vunpack.c.l.b16 %v16
  %v39 = vpack.c.b16 %v38, %v37
  %v48 = vunpack.c.l.b16 %v17
  %v49 = vunpack.c.h.b16 %v17
  %v50 = vunpack.c.l.b16 %v18
  %v51 = vunpack.c.h.b16 %v18
  %v52 = vunpack.c.l.b16 %v19
  %v53 = vunpack.c.h.b16 %v19
  %v54 = vunpack.c.l.b16 %v20
  %v55 = vunpack.c.h.b16 %v20
  %v56 = vunpack.c.l.b16 %v21
  %v57 = vunpack.c.h.b16 %v21
  %v58 = vunpack.c.l.b16 %v22
  %v59 = vunpack.c.h.b16 %v22
  %v60 = vunpack.c.l.b16 %v23
  %v61 = vunpack.c.h.b16 %v23
  %v62 = vunpack.c.l.b16 %v24
  %v63 = vunpack.c.h.b16 %v24
  %v64 = vpack.c.b16 %v52, %v48
  %v65 = vpack.c.b16 %v53, %v49
  %v66 = vpack.c.b16 %v54, %v50
  %v67 = vpack.c.b16 %v55, %v51
  %v68 = vpack.c.b16 %v60, %v56
  %v69 = vpack.c.b16 %v61, %v57
  %v70 = vpack.c.b16 %v62, %v58
  %v71 = vpack.c.b16 %v63, %v59
  %vm80 = vcmask 261120
  %v82 = vsel %vm80, %v39, 0
  %84 = vmatpush.bf16.msra.mxu0 0
  %85 = vmatpush.bf16.msra.mxu0 0
  %86 = vmatpush.bf16.msra.mxu0 0
  %87 = vmatpush.bf16.msra.mxu0 0
  %88 = vmatpush.bf16.msra.mxu0 0
  %89 = vmatpush.bf16.msra.mxu0 0
  %90 = vmatpush.bf16.msra.mxu0 %v68
  %91 = vmatpush.bf16.msra.mxu0 %v64
  %92 = vmatmul.bf16.gmra.mxu0 %v82
  %v93 = vpop.f32.mrf.mxu0
  %v94 = vadd.f32 %v27, %v93
  %v95 = vpop.f32.mrf.mxu0
  %v96 = vadd.f32 %v27, %v95
  %97 = vdwg.mxu0
  %98 = vmatpush.bf16.msra.mxu0 0
  %99 = vmatpush.bf16.msra.mxu0 0
  %100 = vmatpush.bf16.msra.mxu0 0
  %101 = vmatpush.bf16.msra.mxu0 0
  %102 = vmatpush.bf16.msra.mxu0 0
  %103 = vmatpush.bf16.msra.mxu0 0
  %104 = vmatpush.bf16.msra.mxu0 %v69
  %105 = vmatpush.bf16.msra.mxu0 %v65
  %106 = vmatmul.bf16.gmra.mxu0 %v82
  %v107 = vpop.f32.mrf.mxu0
  %v108 = vadd.f32 %v28, %v107
  %v109 = vpop.f32.mrf.mxu0
  %v110 = vadd.f32 %v28, %v109
  %111 = vdwg.mxu0
  %112 = vmatpush.bf16.msra.mxu0 0
  %113 = vmatpush.bf16.msra.mxu0 0
  %114 = vmatpush.bf16.msra.mxu0 0
  %115 = vmatpush.bf16.msra.mxu0 0
  %116 = vmatpush.bf16.msra.mxu0 0
  %117 = vmatpush.bf16.msra.mxu0 0
  %118 = vmatpush.bf16.msra.mxu0 %v70
  %119 = vmatpush.bf16.msra.mxu0 %v66
  %120 = vmatmul.bf16.gmra.mxu0 %v82
  %v121 = vpop.f32.mrf.mxu0
  %v122 = vadd.f32 %v29, %v121
  %v123 = vpop.f32.mrf.mxu0
  %v124 = vadd.f32 %v29, %v123
  %125 = vdwg.mxu0
  %126 = vmatpush.bf16.msra.mxu0 0
  %127 = vmatpush.bf16.msra.mxu0 0
  %128 = vmatpush.bf16.msra.mxu0 0
  %129 = vmatpush.bf16.msra.mxu0 0
  %130 = vmatpush.bf16.msra.mxu0 0
  %131 = vmatpush.bf16.msra.mxu0 0
  %132 = vmatpush.bf16.msra.mxu0 %v71
  %133 = vmatpush.bf16.msra.mxu0 %v67
  %134 = vmatmul.bf16.gmra.mxu0 %v82
  %v135 = vpop.f32.mrf.mxu0
  %v136 = vadd.f32 %v30, %v135
  %v137 = vpop.f32.mrf.mxu0
  %v138 = vadd.f32 %v30, %v137
  %139 = vdwg.mxu0
  %v140 = vpack.c.bf16 %v108, %v94
  %v141 = vpack.c.bf16 %v136, %v122
  %v142 = vpack.c.bf16 %v110, %v96
  %v143 = vpack.c.bf16 %v138, %v124
  %144 = vst [vmem:[%s3] sm:$0xff] %v140
  %145 = vst [vmem:[%s3 + $0x8] sm:$0xff] %v141
  %146 = vst [vmem:[%s3 + $0x10] sm:$0xff] %v142
  %147 = vst [vmem:[%s3 + $0x18] sm:$0xff] %v143
  // Predicated region
  $region14: #{decoder_rnn_forward.3} parent=0 // pred_check
    _
  $region15: #{decoder_rnn_forward.3} parent=0 // pred_check_branch
    %149 = sbr.rel (0) target = $region17
  $region16: #{decoder_rnn_forward.3} parent=0 // pred_region
    _
  $region17: #{decoder_rnn_forward.3} parent=0 // pred_fallthru
    _
  // Predicated region
  $region18: #{decoder_rnn_forward.3} parent=0 // pred_check
    _
  $region19: #{decoder_rnn_forward.3} parent=0 // pred_check_branch
    %151 = sbr.rel (0) target = $region21
  $region20: #{decoder_rnn_forward.3} parent=0 // pred_region
    _
  $region21: #{decoder_rnn_forward.3} parent=0 // pred_fallthru
    _

// kernel: decoder_rnn_forward.5
$region0: #{decoder_rnn_forward.5}
  #allocation0 [shape = 'u32[]', space=smem, size = 0x4, offset = 0x4, fixed_abs, tag = 'smem constant byte address 0x4 - core index']
  #allocation1 [shape = 'u32[72,128]{1,0:T(1,128)}', space=vmem, size = 0x9000, scoped, tag = 'internal scratch']
  %s0 = inlined_call_operand.vmem [shape: bf16[16,128], index: 0, kind: input, shape index: {}]
  %s1 = inlined_call_operand.vmem [shape: bf16[128,128], index: 1, kind: input, shape index: {}]
  %s2 = inlined_call_operand.vmem [shape: f32[1,128], index: 2, kind: input, shape index: {}]
  %s3 = inlined_call_operand.hbm [shape: f32[16,128], index: 3, kind: output, shape index: {}]
  %s4 = sld [smem:[#allocation0]]
  $region22: #{decoder_rnn_forward.5} parent=0
    _
  %s6 = ssub.s32 1, %s4
  %s7 = scalar_select 0, %s6, %s4
  $region1: #{decoder_rnn_forward.5} parent=0
    #allocation2 [shape = 'u8[8192]{0}', space=vmem, size = 0x2000, scoped, tag = 'output window, operand 0, single buffered']
    #allocation3 [shape = 's32[1]{0}', space=sflag, size = 0x4, scoped, tag = 'scoped memory for decoder_rnn_forward.5']
    %8 = vsyncpa [#allocation3], 0
    // Predicated region
    $region2: #{decoder_rnn_forward.5} parent=1 // pred_check
      _
    $region3: #{decoder_rnn_forward.5} parent=1 // pred_check_branch
      %10 = sbr.rel (0) target = $region5
    $region4: #{decoder_rnn_forward.5} parent=1 // pred_region
      _
    $region5: #{decoder_rnn_forward.5} parent=1 // pred_fallthru
      _
    // Predicated region
    $region6: #{decoder_rnn_forward.5} parent=1 // pred_check
      _
    $region7: #{decoder_rnn_forward.5} parent=1 // pred_check_branch
      %12 = sbr.rel (0) target = $region9
    $region8: #{decoder_rnn_forward.5} parent=1 // pred_region
      _
    $region9: #{decoder_rnn_forward.5} parent=1 // pred_fallthru
      _
    // Predicated region
    $region10: #{decoder_rnn_forward.5} parent=1 // pred_check
      _
    $region11: #{decoder_rnn_forward.5} parent=1 // pred_check_branch
      %14 = sbr.rel (0) target = $region13
    $region12: #{decoder_rnn_forward.5} parent=1 // pred_region
      _
    $region13: #{decoder_rnn_forward.5} parent=1 // pred_fallthru
      _
    %v15 = vld [vmem:[%s0] sm:$0xf]
    %v16 = vld [vmem:[%s0 + $0x4] sm:$0xf]
    %v17 = vld [vmem:[%s1] sm:$0xf]
    %v18 = vld [vmem:[%s1 + $0x4] sm:$0xf]
    %v19 = vld [vmem:[%s1 + $0x8] sm:$0xf]
    %v20 = vld [vmem:[%s1 + $0xc] sm:$0xf]
    %v21 = vld [vmem:[%s1 + $0x10] sm:$0xf]
    %v22 = vld [vmem:[%s1 + $0x14] sm:$0xf]
    %v23 = vld [vmem:[%s1 + $0x18] sm:$0xf]
    %v24 = vld [vmem:[%s1 + $0x1c] sm:$0xf]
    %v25 = vld [vmem:[%s1 + $0x20] sm:$0xf]
    %v26 = vld [vmem:[%s1 + $0x24] sm:$0xf]
    %v27 = vld [vmem:[%s1 + $0x28] sm:$0xf]
    %v28 = vld [vmem:[%s1 + $0x2c] sm:$0xf]
    %v29 = vld [vmem:[%s1 + $0x30] sm:$0xf]
    %v30 = vld [vmem:[%s1 + $0x34] sm:$0xf]
    %v31 = vld [vmem:[%s1 + $0x38] sm:$0xf]
    %v32 = vld [vmem:[%s1 + $0x3c] sm:$0xf]
    %v33 = vld [vmem:[%s2] sm:$0x1]
    %v35 = vperm.slane %v33, 0
    %v39 = vunpack.c.l.b16 %v15
    %v40 = vunpack.c.l.b16 %v16
    %v41 = vpack.c.b16 %v40, %v39
    %v59 = vunpack.c.l.b16 %v17
    %v60 = vunpack.c.l.b16 %v18
    %v61 = vunpack.c.l.b16 %v19
    %v62 = vunpack.c.l.b16 %v20
    %v63 = vunpack.c.l.b16 %v21
    %v64 = vunpack.c.l.b16 %v22
    %v65 = vunpack.c.l.b16 %v23
    %v66 = vunpack.c.l.b16 %v24
    %v67 = vunpack.c.l.b16 %v25
    %v68 = vunpack.c.l.b16 %v26
    %v69 = vunpack.c.l.b16 %v27
    %v70 = vunpack.c.l.b16 %v28
    %v71 = vunpack.c.l.b16 %v29
    %v72 = vunpack.c.l.b16 %v30
    %v73 = vunpack.c.l.b16 %v31
    %v74 = vunpack.c.l.b16 %v32
    %v75 = vpack.c.b16 %v60, %v59
    %v76 = vpack.c.b16 %v62, %v61
    %v77 = vpack.c.b16 %v64, %v63
    %v78 = vpack.c.b16 %v66, %v65
    %v79 = vpack.c.b16 %v68, %v67
    %v80 = vpack.c.b16 %v70, %v69
    %v81 = vpack.c.b16 %v72, %v71
    %v82 = vpack.c.b16 %v74, %v73
    %91 = vmatpush.bf16.msra.mxu0 %v82
    %92 = vmatpush.bf16.msra.mxu0 %v81
    %93 = vmatpush.bf16.msra.mxu0 %v80
    %94 = vmatpush.bf16.msra.mxu0 %v79
    %95 = vmatpush.bf16.msra.mxu0 %v78
    %96 = vmatpush.bf16.msra.mxu0 %v77
    %97 = vmatpush.bf16.msra.mxu0 %v76
    %98 = vmatpush.bf16.msra.mxu0 %v75
    %99 = vmatmul.bf16.gmra.mxu0 %v41
    %v100 = vpop.f32.mrf.mxu0
    %v101 = vadd.f32 %v35, %v100
    %v102 = vpop.f32.mrf.mxu0
    %v103 = vadd.f32 %v35, %v102
    %104 = vdwg.mxu0
    %105 = vst [vmem:[#allocation2] sm:$0xff] %v101
    %106 = vst [vmem:[#allocation2 + $0x8] sm:$0xff] %v103
    // Predicated region
    $region14: #{decoder_rnn_forward.5} parent=1 // pred_check
      _
    $region15: #{decoder_rnn_forward.5} parent=1 // pred_check_branch
      %108 = sbr.rel (0) target = $region17
    $region16: #{decoder_rnn_forward.5} parent=1 // pred_region
      %110 = vsyncadd [#allocation3], 0
      %s111 = sshll.u32 [#allocation2], 4
      %s112 = int_to_ptr.vmem [resolvable:$true] %s111
      %s113 = sshll.u32 %s3, 4
      %s114 = int_to_ptr.hbm [resolvable:$true] %s113
      %119 = dma.vmem_to_hbm [thread:$0]  %s112, 256, %s114, [#allocation3], 128, 128, 8
    $region17: #{decoder_rnn_forward.5} parent=1 // pred_fallthru
      _
    // Predicated region
    $region18: #{decoder_rnn_forward.5} parent=1 // pred_check
      _
    $region19: #{decoder_rnn_forward.5} parent=1 // pred_check_branch
      %121 = sbr.rel (0) target = $region21
    $region20: #{decoder_rnn_forward.5} parent=1 // pred_region
      %123 = dma.done [#allocation3], 256
    $region21: #{decoder_rnn_forward.5} parent=1 // pred_fallthru
      _
    %124 = vsyncpa [#allocation3], 1

// kernel: decoder_rnn_forward.4
$region0: #{decoder_rnn_forward.4}
  #allocation0 [shape = 'u32[]', space=smem, size = 0x4, offset = 0x4, fixed_abs, tag = 'smem constant byte address 0x4 - core index']
  #allocation1 [shape = 'u32[72,128]{1,0:T(1,128)}', space=vmem, size = 0x9000, scoped, tag = 'internal scratch']
  #allocation2 [shape = 'bf16[1,128]{1,0:T(2,128)(2,1)}', space=vmem, size = 0x200, scoped, tag = 'scratch operand']
  #allocation3 [shape = 'f32[1,128]{1,0:T(1,128)}', space=vmem, size = 0x200, scoped, tag = 'scratch operand']
  %s0 = inlined_call_operand.vmem [shape: bf16[2,8,512], index: 0, kind: input, shape index: {}]
  %s1 = inlined_call_operand.vmem [shape: bf16[128,512], index: 1, kind: input, shape index: {}]
  %s2 = inlined_call_operand.vmem [shape: bf16[2,8,128], index: 2, kind: output, shape index: {}]
  %s3 = sld [smem:[#allocation0]]
  $region45: #{decoder_rnn_forward.4} parent=0
    _
  %s5 = ssub.s32 1, %s3
  %s6 = scalar_select 0, %s5, %s3
  loop: start=0, step=1, limit=4
  $region2: #{decoder_rnn_forward.4} parent=0 // loop_pre_header
    _
  $region3: #{decoder_rnn_forward.4} parent=0 // loop_header
    %s8 = sphi 0, %s12
    %p9 = scmp.ge.s32.totalorder %s8, 4
    %s15 = sphi 0, %s27
    %s16 = sphi 0, %s23
    %s17 = sphi 0, %s15
    %s18 = sphi 0, %s16
    %s19 = sphi 0, %s17
    %s20 = sphi 0, %s18
    %s32 = sphi 0, %s34
    %s35 = sphi 0, %s32
    %s36 = sphi 0, %s35
    %s52 = sphi 0, %s36
    %s56 = sphi 0, %s56
    %s58 = sphi 0, %s56
    %s59 = sphi 0, %s58
    %s73 = sphi 0, %s59
    %s81 = sphi 0, %s83
    %s84 = sphi 0, %s81
    %s85 = sphi 0, %s84
    %s101 = sphi 0, %s85
  $region4: #{decoder_rnn_forward.4} parent=0 // loop_header_branch
    %11 = sbr.rel (%p9) target = $region8
  $region5: #{decoder_rnn_forward.4} parent=0 // loop_body
    %s13 = ssub.s32 %s8, 1
    %s14 = ssub.s32 %s8, 2
    %s21 = sadd.s32 1, %s16
    %p22 = scmp.ge.s32.totalorder %s21, 1
    %s23 = scalar_select %p22, 0, %s21
    %s24 = sadd.s32 1, %s15
    %s25 = scalar_select %p22, %s24, %s15
    %p26 = scmp.ge.s32.totalorder %s25, 2
    %s27 = scalar_select %p26, 0, %s25
    %s28 = ssub.s32 %s15, %s27
    %s29 = ssub.s32 %s16, %s23
    %s30 = sor.u32 %s28, %s29
    %p31 = scmp.eq.s32.totalorder %s30, 0
    %s33 = sadd.s32 %s32, 1
    %s34 = scalar_select %p31, %s32, %s33
    %p37 = pneg %p31
    %p38 = scmp.eq.s32.totalorder %s8, 1
    %p39 = por %p37, %p38
    %p40 = scmp.ne.s32.totalorder %s32, %s35
    %p41 = scmp.eq.s32.totalorder %s8, 0
    %p42 = por %p40, %p41
    %p43 = scmp.ne.s32.totalorder %s32, %s35
    %p44 = scmp.eq.s32.totalorder %s13, 1
    %p45 = por %p43, %p44
    %p46 = scmp.ne.s32.totalorder %s35, %s36
    %p47 = scmp.eq.s32.totalorder %s13, 0
    %p48 = por %p46, %p47
    %p49 = scmp.ne.s32.totalorder %s35, %s36
    %p50 = scmp.eq.s32.totalorder %s14, 1
    %p51 = por %p49, %p50
    %p53 = scmp.ne.s32.totalorder %s36, %s52
    %p54 = scmp.eq.s32.totalorder %s14, 0
    %p55 = por %p53, %p54
    %s57 = sadd.s32 %s56, 1
    %p60 = scmp.eq.s32.totalorder %s8, 1
    %p61 = scmp.ne.s32.totalorder %s56, %s58
    %p62 = scmp.eq.s32.totalorder %s8, 0
    %p63 = por %p61, %p62
    %p64 = scmp.ne.s32.totalorder %s56, %s58
    %p65 = scmp.eq.s32.totalorder %s13, 1
    %p66 = por %p64, %p65
    %p67 = scmp.ne.s32.totalorder %s58, %s59
    %p68 = scmp.eq.s32.totalorder %s13, 0
    %p69 = por %p67, %p68
    %p70 = scmp.ne.s32.totalorder %s58, %s59
    %p71 = scmp.eq.s32.totalorder %s14, 1
    %p72 = por %p70, %p71
    %p74 = scmp.ne.s32.totalorder %s59, %s73
    %p75 = scmp.eq.s32.totalorder %s14, 0
    %p76 = por %p74, %p75
    %s77 = ssub.s32 %s15, %s27
    %s78 = ssub.s32 %s16, %s23
    %s79 = sor.u32 %s77, %s78
    %p80 = scmp.eq.s32.totalorder %s79, 0
    %s82 = sadd.s32 %s81, 1
    %s83 = scalar_select %p80, %s81, %s82
    %p86 = pneg %p80
    %p87 = scmp.eq.s32.totalorder %s8, 1
    %p88 = por %p86, %p87
    %p89 = scmp.ne.s32.totalorder %s81, %s84
    %p90 = scmp.eq.s32.totalorder %s8, 0
    %p91 = por %p89, %p90
    %p92 = scmp.ne.s32.totalorder %s81, %s84
    %p93 = scmp.eq.s32.totalorder %s13, 1
    %p94 = por %p92, %p93
    %p95 = scmp.ne.s32.totalorder %s84, %s85
    %p96 = scmp.eq.s32.totalorder %s13, 0
    %p97 = por %p95, %p96
    %p98 = scmp.ne.s32.totalorder %s84, %s85
    %p99 = scmp.eq.s32.totalorder %s14, 1
    %p100 = por %p98, %p99
    %p102 = scmp.ne.s32.totalorder %s85, %s101
    %p103 = scmp.eq.s32.totalorder %s14, 0
    %p104 = por %p102, %p103
    %p105 = scmp.le.s32.totalorder 1, %s8
    %p106 = scmp.lt.s32.totalorder %s8, 3
    %p107 = pnand %p105, %p106
    %p108 = pneg %p107
    // Predicated region
    $region9: #{decoder_rnn_forward.4} parent=5 // pred_check
      _
    $region10: #{decoder_rnn_forward.4} parent=5 // pred_check_branch
      %110 = sbr.rel (%p107) target = $region12
    $region11: #{decoder_rnn_forward.4} parent=5 // pred_region
      %s111 = ssub.s32 %s8, 1
      // Predicated region
      $region13: #{decoder_rnn_forward.4} parent=11 // pred_check
        %p112 = pneg %p69
      $region14: #{decoder_rnn_forward.4} parent=11 // pred_check_branch
        %114 = sbr.rel (%p112) target = $region16
      $region15: #{decoder_rnn_forward.4} parent=11 // pred_region
        _
      $region16: #{decoder_rnn_forward.4} parent=11 // pred_fallthru
        _
    $region12: #{decoder_rnn_forward.4} parent=5 // pred_fallthru
      _
    %p115 = scmp.lt.s32.totalorder %s8, 2
    // Predicated region
    $region17: #{decoder_rnn_forward.4} parent=5 // pred_check
      %p116 = pneg %p115
    $region18: #{decoder_rnn_forward.4} parent=5 // pred_check_branch
      %118 = sbr.rel (%p116) target = $region20
    $region19: #{decoder_rnn_forward.4} parent=5 // pred_region
      // Predicated region
      $region21: #{decoder_rnn_forward.4} parent=19 // pred_check
        %p119 = pneg %p42
      $region22: #{decoder_rnn_forward.4} parent=19 // pred_check_branch
        %121 = sbr.rel (%p119) target = $region24
      $region23: #{decoder_rnn_forward.4} parent=19 // pred_region
        %p122 = scmp.lt.s32.totalorder %s15, 1
        %s123 = scalar_select %p122, %s15, 1
        %p124 = scmp.lt.s32.totalorder %s16, 0
        %s125 = scalar_select %p124, %s16, 0
        %s126 = smul.addr %s125, 4
        %s127 = smul.addr %s123, 4
        %s128 = sadd.s32 %s126, %s127
        %s129 = smul.addr %s128, 4
        %s130 = scalar_lea.vmem %s0, %s129
      $region24: #{decoder_rnn_forward.4} parent=19 // pred_fallthru
        _
    $region20: #{decoder_rnn_forward.4} parent=5 // pred_fallthru
      _
    %p131 = scmp.le.s32.totalorder 1, %s8
    %p132 = scmp.lt.s32.totalorder %s8, 3
    %p133 = pnand %p131, %p132
    %p134 = pneg %p133
    // Predicated region
    $region25: #{decoder_rnn_forward.4} parent=5 // pred_check
      _
    $region26: #{decoder_rnn_forward.4} parent=5 // pred_check_branch
      %136 = sbr.rel (%p133) target = $region28
    $region27: #{decoder_rnn_forward.4} parent=5 // pred_region
      %s137 = ssub.s32 %s8, 1
      %p138 = scmp.lt.s32.totalorder %s17, 1
      %s139 = scalar_select %p138, %s17, 1
      %p140 = scmp.lt.s32.totalorder %s18, 0
      %s141 = scalar_select %p140, %s18, 0
      %s142 = smul.addr %s141, 4
      %s143 = smul.addr %s139, 4
      %s144 = sadd.s32 %s142, %s143
      %s145 = smul.addr %s144, 4
      %s146 = scalar_lea.vmem %s0, %s145
      %p147 = pneg %p48
      %p148 = pneg %p45
      %p149 = pneg %p69
      %p150 = pneg %p66
      %p151 = pneg %p97
      %p152 = pneg %p94
      %p153 = scmp.lt.s32.totalorder %s17, 1
      %s154 = scalar_select %p153, %s17, 1
      %p155 = scmp.lt.s32.totalorder %s18, 0
      %s156 = scalar_select %p155, %s18, 0
      %s157 = sadd.s32 %s156, %s154
      %s158 = smul.addr %s157, 4
      %s159 = scalar_lea.vmem %s2, %s158
      %p160 = scmp.lt.s32.totalorder %s17, 1
      %s161 = scalar_select %p160, %s17, 1
      %p162 = scmp.lt.s32.totalorder %s18, 0
      %s163 = scalar_select %p162, %s18, 0
      %s164 = smul.addr %s163, 4
      %s165 = smul.addr %s161, 4
      %s166 = sadd.s32 %s164, %s165
      %s167 = smul.addr %s166, 4
      %s168 = scalar_lea.vmem %s0, %s167
      %p169 = scmp.lt.s32.totalorder %s17, 1
      %s170 = scalar_select %p169, %s17, 1
      %p171 = scmp.lt.s32.totalorder %s18, 0
      %s172 = scalar_select %p171, %s18, 0
      %s173 = sadd.s32 %s172, %s170
      %s174 = smul.addr %s173, 4
      %s175 = scalar_lea.vmem %s2, %s174
      %p177 = scmp.eq.s32.totalorder %s18, 0
      // Predicated region
      $region29: #{decoder_rnn_forward.4} parent=27 // pred_check
        %p178 = pneg %p177
      $region30: #{decoder_rnn_forward.4} parent=27 // pred_check_branch
        %180 = sbr.rel (%p178) target = $region32
      $region31: #{decoder_rnn_forward.4} parent=27 // pred_region
        %vm181 = vcmask 1040384
        %vm182 = vsmask.f32 256
        %vm183 = vmand %vm181, %vm182
        %v184 = vld [vmem:[#allocation2] sm:$0x1]
        %v185 = vsel %vm183, 0, %v184
        %186 = vst [vmem:[#allocation2] sm:$0x1] %v185
        %187 = vst [vmem:[#allocation3] sm:$0x1] 0.0
      $region32: #{decoder_rnn_forward.4} parent=27 // pred_fallthru
        _
      %v188 = vld [vmem:[%s1] sm:$0xff]
      %v189 = vld [vmem:[%s1 + $0x8] sm:$0xff]
      %v190 = vld [vmem:[%s1 + $0x10] sm:$0xff]
      %v191 = vld [vmem:[%s1 + $0x18] sm:$0xff]
      %v192 = vld [vmem:[%s1 + $0x20] sm:$0xff]
      %v193 = vld [vmem:[%s1 + $0x28] sm:$0xff]
      %v194 = vld [vmem:[%s1 + $0x30] sm:$0xff]
      %v195 = vld [vmem:[%s1 + $0x38] sm:$0xff]
      %v196 = vld [vmem:[%s1 + $0x40] sm:$0xff]
      %v197 = vld [vmem:[%s1 + $0x48] sm:$0xff]
      %v198 = vld [vmem:[%s1 + $0x50] sm:$0xff]
      %v199 = vld [vmem:[%s1 + $0x58] sm:$0xff]
      %v200 = vld [vmem:[%s1 + $0x60] sm:$0xff]
      %v201 = vld [vmem:[%s1 + $0x68] sm:$0xff]
      %v202 = vld [vmem:[%s1 + $0x70] sm:$0xff]
      %v203 = vld [vmem:[%s1 + $0x78] sm:$0xff]
      %v204 = vld [vmem:[%s1 + $0x80] sm:$0xff]
      %v205 = vld [vmem:[%s1 + $0x88] sm:$0xff]
      %v206 = vld [vmem:[%s1 + $0x90] sm:$0xff]
      %v207 = vld [vmem:[%s1 + $0x98] sm:$0xff]
      %v208 = vld [vmem:[%s1 + $0xa0] sm:$0xff]
      %v209 = vld [vmem:[%s1 + $0xa8] sm:$0xff]
      %v210 = vld [vmem:[%s1 + $0xb0] sm:$0xff]
      %v211 = vld [vmem:[%s1 + $0xb8] sm:$0xff]
      %v212 = vld [vmem:[%s1 + $0xc0] sm:$0xff]
      %v213 = vld [vmem:[%s1 + $0xc8] sm:$0xff]
      %v214 = vld [vmem:[%s1 + $0xd0] sm:$0xff]
      %v215 = vld [vmem:[%s1 + $0xd8] sm:$0xff]
      %v216 = vld [vmem:[%s1 + $0xe0] sm:$0xff]
      %v217 = vld [vmem:[%s1 + $0xe8] sm:$0xff]
      %v218 = vld [vmem:[%s1 + $0xf0] sm:$0xff]
      %v219 = vld [vmem:[%s1 + $0xf8] sm:$0xff]
      %v220 = vld [vmem:[#allocation2] sm:$0x1]
      %v221 = vld [vmem:[#allocation3] sm:$0x1]
      %v222 = vld [vmem:[%s168] sm:$0x11]
      %v223 = vld [vmem:[%s168 + $0x8] sm:$0x11]
      %v224 = vunpack.c.l.bf16 %v222
      %v225 = vunpack.c.h.bf16 %v222
      %v226 = vunpack.c.l.bf16 %v223
      %v227 = vunpack.c.h.bf16 %v223
      %v260 = vunpack.c.l.b16 %v188
      %v261 = vunpack.c.h.b16 %v188
      %v262 = vunpack.c.l.b16 %v189
      %v263 = vunpack.c.h.b16 %v189
      %v264 = vunpack.c.l.b16 %v190
      %v265 = vunpack.c.h.b16 %v190
      %v266 = vunpack.c.l.b16 %v191
      %v267 = vunpack.c.h.b16 %v191
      %v268 = vunpack.c.l.b16 %v192
      %v269 = vunpack.c.h.b16 %v192
      %v270 = vunpack.c.l.b16 %v193
      %v271 = vunpack.c.h.b16 %v193
      %v272 = vunpack.c.l.b16 %v194
      %v273 = vunpack.c.h.b16 %v194
      %v274 = vunpack.c.l.b16 %v195
      %v275 = vunpack.c.h.b16 %v195
      %v276 = vunpack.c.l.b16 %v196
      %v277 = vunpack.c.h.b16 %v196
      %v278 = vunpack.c.l.b16 %v197
      %v279 = vunpack.c.h.b16 %v197
      %v280 = vunpack.c.l.b16 %v198
      %v281 = vunpack.c.h.b16 %v198
      %v282 = vunpack.c.l.b16 %v199
      %v283 = vunpack.c.h.b16 %v199
      %v284 = vunpack.c.l.b16 %v200
      %v285 = vunpack.c.h.b16 %v200
      %v286 = vunpack.c.l.b16 %v201
      %v287 = vunpack.c.h.b16 %v201
      %v288 = vunpack.c.l.b16 %v202
      %v289 = vunpack.c.h.b16 %v202
      %v290 = vunpack.c.l.b16 %v203
      %v291 = vunpack.c.h.b16 %v203
      %v292 = vunpack.c.l.b16 %v204
      %v293 = vunpack.c.h.b16 %v204
      %v294 = vunpack.c.l.b16 %v205
      %v295 = vunpack.c.h.b16 %v205
      %v296 = vunpack.c.l.b16 %v206
      %v297 = vunpack.c.h.b16 %v206
      %v298 = vunpack.c.l.b16 %v207
      %v299 = vunpack.c.h.b16 %v207
      %v300 = vunpack.c.l.b16 %v208
      %v301 = vunpack.c.h.b16 %v208
      %v302 = vunpack.c.l.b16 %v209
      %v303 = vunpack.c.h.b16 %v209
      %v304 = vunpack.c.l.b16 %v210
      %v305 = vunpack.c.h.b16 %v210
      %v306 = vunpack.c.l.b16 %v211
      %v307 = vunpack.c.h.b16 %v211
      %v308 = vunpack.c.l.b16 %v212
      %v309 = vunpack.c.h.b16 %v212
      %v310 = vunpack.c.l.b16 %v213
      %v311 = vunpack.c.h.b16 %v213
      %v312 = vunpack.c.l.b16 %v214
      %v313 = vunpack.c.h.b16 %v214
      %v314 = vunpack.c.l.b16 %v215
      %v315 = vunpack.c.h.b16 %v215
      %v316 = vunpack.c.l.b16 %v216
      %v317 = vunpack.c.h.b16 %v216
      %v318 = vunpack.c.l.b16 %v217
      %v319 = vunpack.c.h.b16 %v217
      %v320 = vunpack.c.l.b16 %v218
      %v321 = vunpack.c.h.b16 %v218
      %v322 = vunpack.c.l.b16 %v219
      %v323 = vunpack.c.h.b16 %v219
      %v324 = vpack.c.b16 %v264, %v260
      %v325 = vpack.c.b16 %v265, %v261
      %v326 = vpack.c.b16 %v266, %v262
      %v327 = vpack.c.b16 %v267, %v263
      %v328 = vpack.c.b16 %v272, %v268
      %v329 = vpack.c.b16 %v273, %v269
      %v330 = vpack.c.b16 %v274, %v270
      %v331 = vpack.c.b16 %v275, %v271
      %v332 = vpack.c.b16 %v280, %v276
      %v333 = vpack.c.b16 %v281, %v277
      %v334 = vpack.c.b16 %v282, %v278
      %v335 = vpack.c.b16 %v283, %v279
      %v336 = vpack.c.b16 %v288, %v284
      %v337 = vpack.c.b16 %v289, %v285
      %v338 = vpack.c.b16 %v290, %v286
      %v339 = vpack.c.b16 %v291, %v287
      %v340 = vpack.c.b16 %v296, %v292
      %v341 = vpack.c.b16 %v297, %v293
      %v342 = vpack.c.b16 %v298, %v294
      %v343 = vpack.c.b16 %v299, %v295
      %v344 = vpack.c.b16 %v304, %v300
      %v345 = vpack.c.b16 %v305, %v301
      %v346 = vpack.c.b16 %v306, %v302
      %v347 = vpack.c.b16 %v307, %v303
      %v348 = vpack.c.b16 %v312, %v308
      %v349 = vpack.c.b16 %v313, %v309
      %v350 = vpack.c.b16 %v314, %v310
      %v351 = vpack.c.b16 %v315, %v311
      %v352 = vpack.c.b16 %v320, %v316
      %v353 = vpack.c.b16 %v321, %v317
      %v354 = vpack.c.b16 %v322, %v318
      %v355 = vpack.c.b16 %v323, %v319
      %388 = vmatpush.bf16.msra.mxu0 %v352
      %389 = vmatpush.bf16.msra.mxu0 %v348
      %390 = vmatpush.bf16.msra.mxu0 %v344
      %391 = vmatpush.bf16.msra.mxu0 %v340
      %392 = vmatpush.bf16.msra.mxu0 %v336
      %393 = vmatpush.bf16.msra.mxu0 %v332
      %394 = vmatpush.bf16.msra.mxu0 %v328
      %395 = vmatpush.bf16.msra.mxu0 %v324
      %396 = vmatmul.bf16.gmra.mxu0 %v220
      %v397 = vpop.f32.mrf.mxu0
      %v398 = vadd.f32 0.0, %v397
      %v399 = vpop.f32.mrf.mxu0
      %400 = vdwg.mxu0
      %401 = vmatpush.bf16.msra.mxu0 %v353
      %402 = vmatpush.bf16.msra.mxu0 %v349
      %403 = vmatpush.bf16.msra.mxu0 %v345
      %404 = vmatpush.bf16.msra.mxu0 %v341
      %405 = vmatpush.bf16.msra.mxu0 %v337
      %406 = vmatpush.bf16.msra.mxu0 %v333
      %407 = vmatpush.bf16.msra.mxu0 %v329
      %408 = vmatpush.bf16.msra.mxu0 %v325
      %409 = vmatmul.bf16.gmra.mxu0 %v220
      %v410 = vpop.f32.mrf.mxu0
      %v411 = vadd.f32 0.0, %v410
      %v412 = vpop.f32.mrf.mxu0
      %413 = vdwg.mxu0
      %414 = vmatpush.bf16.msra.mxu0 %v354
      %415 = vmatpush.bf16.msra.mxu0 %v350
      %416 = vmatpush.bf16.msra.mxu0 %v346
      %417 = vmatpush.bf16.msra.mxu0 %v342
      %418 = vmatpush.bf16.msra.mxu0 %v338
      %419 = vmatpush.bf16.msra.mxu0 %v334
      %420 = vmatpush.bf16.msra.mxu0 %v330
      %421 = vmatpush.bf16.msra.mxu0 %v326
      %422 = vmatmul.bf16.gmra.mxu0 %v220
      %v423 = vpop.f32.mrf.mxu0
      %v424 = vadd.f32 0.0, %v423
      %v425 = vpop.f32.mrf.mxu0
      %426 = vdwg.mxu0
      %427 = vmatpush.bf16.msra.mxu0 %v355
      %428 = vmatpush.bf16.msra.mxu0 %v351
      %429 = vmatpush.bf16.msra.mxu0 %v347
      %430 = vmatpush.bf16.msra.mxu0 %v343
      %431 = vmatpush.bf16.msra.mxu0 %v339
      %432 = vmatpush.bf16.msra.mxu0 %v335
      %433 = vmatpush.bf16.msra.mxu0 %v331
      %434 = vmatpush.bf16.msra.mxu0 %v327
      %435 = vmatmul.bf16.gmra.mxu0 %v220
      %v436 = vpop.f32.mrf.mxu0
      %v437 = vadd.f32 0.0, %v436
      %v438 = vpop.f32.mrf.mxu0
      %439 = vdwg.mxu0
      %v440 = vadd.f32 %v224, %v398
      %v441 = vadd.f32 %v225, %v411
      %v442 = vadd.f32 %v226, %v424
      %v443 = vadd.f32 %v227, %v437
      %v444 = vxor.u32 %v440, 2147483648
      %v445 = vmul.f32 %v444, 1.442695
      %v446 = vpow.pop %v445
      %v447 = vadd.f32 %v446, 1.0
      %v448 = vrcp.pop %v447
      %v449 = vmul.f32 %v447, %v448
      %v450 = vsub.f32 1.0, %v449
      %v451 = vmul.f32 %v448, %v450
      %v452 = vadd.f32 %v448, %v451
      %vm453 = vweird.f32 %v447
      %vm454 = vweird.f32 %v448
      %vm455 = vmor %vm453, %vm454
      %v456 = vsel %vm455, %v448, %v452
      %v457 = vand.u32 2147483647, %v447
      %vm458 = vcmp.eq.f32.partialorder %v457, 8.507059e+37
      %v459 = vand.u32 %v447, 2147483648
      %v460 = vor.u32 1.1754944e-38, %v459
      %v461 = vsel %vm458, %v460, %v456
      %v462 = vmul.f32 1.0, %v461
      %v463 = vxor.u32 %v441, 2147483648
      %v464 = vmul.f32 %v463, 1.442695
      %v465 = vpow.pop %v464
      %v466 = vadd.f32 %v465, 1.0
      %v467 = vrcp.pop %v466
      %v468 = vmul.f32 %v466, %v467
      %v469 = vsub.f32 1.0, %v468
      %v470 = vmul.f32 %v467, %v469
      %v471 = vadd.f32 %v467, %v470
      %vm472 = vweird.f32 %v466
      %vm473 = vweird.f32 %v467
      %vm474 = vmor %vm472, %vm473
      %v475 = vsel %vm474, %v467, %v471
      %v476 = vand.u32 2147483647, %v466
      %vm477 = vcmp.eq.f32.partialorder %v476, 8.507059e+37
      %v478 = vand.u32 %v466, 2147483648
      %v479 = vor.u32 1.1754944e-38, %v478
      %v480 = vsel %vm477, %v479, %v475
      %v481 = vmul.f32 1.0, %v480
      %v482 = vtanh.pop %v442
      %v483 = vxor.u32 %v443, 2147483648
      %v484 = vmul.f32 %v483, 1.442695
      %v485 = vpow.pop %v484
      %v486 = vadd.f32 %v485, 1.0
      %v487 = vrcp.pop %v486
      %v488 = vmul.f32 %v486, %v487
      %v489 = vsub.f32 1.0, %v488
      %v490 = vmul.f32 %v487, %v489
      %v491 = vadd.f32 %v487, %v490
      %vm492 = vweird.f32 %v486
      %vm493 = vweird.f32 %v487
      %vm494 = vmor %vm492, %vm493
      %v495 = vsel %vm494, %v487, %v491
      %v496 = vand.u32 2147483647, %v486
      %vm497 = vcmp.eq.f32.partialorder %v496, 8.507059e+37
      %v498 = vand.u32 %v486, 2147483648
      %v499 = vor.u32 1.1754944e-38, %v498
      %v500 = vsel %vm497, %v499, %v495
      %v501 = vmul.f32 1.0, %v500
      %v502 = vmul.f32 %v481, %v221
      %v503 = vmul.f32 %v462, %v482
      %v504 = vadd.f32 %v502, %v503
      %v505 = vtanh.pop %v504
      %v506 = vmul.f32 %v501, %v505
      %v507 = vpack.c.bf16 %v506, %v506
      %vm508 = vcmask 1040384
      %vm509 = vsmask.f32 256
      %vm510 = vmand %vm508, %vm509
      %v511 = vld [vmem:[%s175] sm:$0x1]
      %v512 = vsel %vm510, %v507, %v511
      %513 = vst [vmem:[%s175] sm:$0x1] %v512
      %v514 = vld [vmem:[%s168] sm:$0x11]
      %v515 = vld [vmem:[%s168 + $0x8] sm:$0x11]
      %v516 = vunpack.c.l.bf16 %v514
      %v517 = vunpack.c.h.bf16 %v514
      %v518 = vunpack.c.l.bf16 %v515
      %v519 = vunpack.c.h.bf16 %v515
      %520 = vmatpush.bf16.msra.mxu0 %v352
      %521 = vmatpush.bf16.msra.mxu0 %v348
      %522 = vmatpush.bf16.msra.mxu0 %v344
      %523 = vmatpush.bf16.msra.mxu0 %v340
      %524 = vmatpush.bf16.msra.mxu0 %v336
      %525 = vmatpush.bf16.msra.mxu0 %v332
      %526 = vmatpush.bf16.msra.mxu0 %v328
      %527 = vmatpush.bf16.msra.mxu0 %v324
      %528 = vmatmul.bf16.gmra.mxu0 %v507
      %v529 = vpop.f32.mrf.mxu0
      %v530 = vadd.f32 0.0, %v529
      %v531 = vpop.f32.mrf.mxu0
      %532 = vdwg.mxu0
      %533 = vmatpush.bf16.msra.mxu0 %v353
      %534 = vmatpush.bf16.msra.mxu0 %v349
      %535 = vmatpush.bf16.msra.mxu0 %v345
      %536 = vmatpush.bf16.msra.mxu0 %v341
      %537 = vmatpush.bf16.msra.mxu0 %v337
      %538 = vmatpush.bf16.msra.mxu0 %v333
      %539 = vmatpush.bf16.msra.mxu0 %v329
      %540 = vmatpush.bf16.msra.mxu0 %v325
      %541 = vmatmul.bf16.gmra.mxu0 %v507
      %v542 = vpop.f32.mrf.mxu0
      %v543 = vadd.f32 0.0, %v542
      %v544 = vpop.f32.mrf.mxu0
      %545 = vdwg.mxu0
      %546 = vmatpush.bf16.msra.mxu0 %v354
      %547 = vmatpush.bf16.msra.mxu0 %v350
      %548 = vmatpush.bf16.msra.mxu0 %v346
      %549 = vmatpush.bf16.msra.mxu0 %v342
      %550 = vmatpush.bf16.msra.mxu0 %v338
      %551 = vmatpush.bf16.msra.mxu0 %v334
      %552 = vmatpush.bf16.msra.mxu0 %v330
      %553 = vmatpush.bf16.msra.mxu0 %v326
      %554 = vmatmul.bf16.gmra.mxu0 %v507
      %v555 = vpop.f32.mrf.mxu0
      %v556 = vadd.f32 0.0, %v555
      %v557 = vpop.f32.mrf.mxu0
      %558 = vdwg.mxu0
      %559 = vmatpush.bf16.msra.mxu0 %v355
      %560 = vmatpush.bf16.msra.mxu0 %v351
      %561 = vmatpush.bf16.msra.mxu0 %v347
      %562 = vmatpush.bf16.msra.mxu0 %v343
      %563 = vmatpush.bf16.msra.mxu0 %v339
      %564 = vmatpush.bf16.msra.mxu0 %v335
      %565 = vmatpush.bf16.msra.mxu0 %v331
      %566 = vmatpush.bf16.msra.mxu0 %v327
      %567 = vmatmul.bf16.gmra.mxu0 %v507
      %v568 = vpop.f32.mrf.mxu0
      %v569 = vadd.f32 0.0, %v568
      %v570 = vpop.f32.mrf.mxu0
      %571 = vdwg.mxu0
      %v576 = vrot.slane %v530, 7
      %v577 = vrot.slane %v543, 7
      %v578 = vrot.slane %v556, 7
      %v579 = vrot.slane %v569, 7
      %v584 = vadd.f32 %v516, %v576
      %v585 = vadd.f32 %v517, %v577
      %v586 = vadd.f32 %v518, %v578
      %v587 = vadd.f32 %v519, %v579
      %v588 = vxor.u32 %v584, 2147483648
      %v589 = vmul.f32 %v588, 1.442695
      %v590 = vpow.pop %v589
      %v591 = vadd.f32 %v590, 1.0
      %v592 = vrcp.pop %v591
      %v593 = vmul.f32 %v591, %v592
      %v594 = vsub.f32 1.0, %v593
      %v595 = vmul.f32 %v592, %v594
      %v596 = vadd.f32 %v592, %v595
      %vm597 = vweird.f32 %v591
      %vm598 = vweird.f32 %v592
      %vm599 = vmor %vm597, %vm598
      %v600 = vsel %vm599, %v592, %v596
      %v601 = vand.u32 2147483647, %v591
      %vm602 = vcmp.eq.f32.partialorder %v601, 8.507059e+37
      %v603 = vand.u32 %v591, 2147483648
      %v604 = vor.u32 1.1754944e-38, %v603
      %v605 = vsel %vm602, %v604, %v600
      %v606 = vmul.f32 1.0, %v605
      %v607 = vxor.u32 %v585, 2147483648
      %v608 = vmul.f32 %v607, 1.442695
      %v609 = vpow.pop %v608
      %v610 = vadd.f32 %v609, 1.0
      %v611 = vrcp.pop %v610
      %v612 = vmul.f32 %v610, %v611
      %v613 = vsub.f32 1.0, %v612
      %v614 = vmul.f32 %v611, %v613
      %v615 = vadd.f32 %v611, %v614
      %vm616 = vweird.f32 %v610
      %vm617 = vweird.f32 %v611
      %vm618 = vmor %vm616, %vm617
      %v619 = vsel %vm618, %v611, %v615
      %v620 = vand.u32 2147483647, %v610
      %vm621 = vcmp.eq.f32.partialorder %v620, 8.507059e+37
      %v622 = vand.u32 %v610, 2147483648
      %v623 = vor.u32 1.1754944e-38, %v622
      %v624 = vsel %vm621, %v623, %v619
      %v625 = vmul.f32 1.0, %v624
      %v626 = vtanh.pop %v586
      %v627 = vxor.u32 %v587, 2147483648
      %v628 = vmul.f32 %v627, 1.442695
      %v629 = vpow.pop %v628
      %v630 = vadd.f32 %v629, 1.0
      %v631 = vrcp.pop %v630
      %v632 = vmul.f32 %v630, %v631
      %v633 = vsub.f32 1.0, %v632
      %v634 = vmul.f32 %v631, %v633
      %v635 = vadd.f32 %v631, %v634
      %vm636 = vweird.f32 %v630
      %vm637 = vweird.f32 %v631
      %vm638 = vmor %vm636, %vm637
      %v639 = vsel %vm638, %v631, %v635
      %v640 = vand.u32 2147483647, %v630
      %vm641 = vcmp.eq.f32.partialorder %v640, 8.507059e+37
      %v642 = vand.u32 %v630, 2147483648
      %v643 = vor.u32 1.1754944e-38, %v642
      %v644 = vsel %vm641, %v643, %v639
      %v645 = vmul.f32 1.0, %v644
      %v647 = vrot.slane %v504, 7
      %v649 = vmul.f32 %v625, %v647
      %v650 = vmul.f32 %v606, %v626
      %v651 = vadd.f32 %v649, %v650
      %v652 = vtanh.pop %v651
      %v653 = vmul.f32 %v645, %v652
      %v654 = vpack.c.bf16 %v653, %v653
      %vm655 = vsmask.f32 7938
      %vm656 = vmand %vm508, %vm655
      %v657 = vld [vmem:[%s175] sm:$0x1]
      %v658 = vsel %vm656, %v654, %v657
      %659 = vst [vmem:[%s175] sm:$0x1] %v658
      %v660 = vld [vmem:[%s168] sm:$0x22]
      %v661 = vld [vmem:[%s168 + $0x8] sm:$0x22]
      %v662 = vunpack.c.l.bf16 %v660
      %v663 = vunpack.c.h.bf16 %v660
      %v664 = vunpack.c.l.bf16 %v661
      %v665 = vunpack.c.h.bf16 %v661
      %v667 = vunpack.c.l.b16 %v654
      %v668 = vpack.c.b16 %v667, %v667
      %v670 = vshrl.u32 %v668, 16
      %673 = vmatpush.bf16.msra.mxu0 %v352
      %674 = vmatpush.bf16.msra.mxu0 %v348
      %675 = vmatpush.bf16.msra.mxu0 %v344
      %676 = vmatpush.bf16.msra.mxu0 %v340
      %677 = vmatpush.bf16.msra.mxu0 %v336
      %678 = vmatpush.bf16.msra.mxu0 %v332
      %679 = vmatpush.bf16.msra.mxu0 %v328
      %680 = vmatpush.bf16.msra.mxu0 %v324
      %681 = vmatmul.bf16.gmra.mxu0 %v670
      %v682 = vpop.f32.mrf.mxu0
      %v683 = vadd.f32 0.0, %v682
      %v684 = vpop.f32.mrf.mxu0
      %685 = vdwg.mxu0
      %686 = vmatpush.bf16.msra.mxu0 %v353
      %687 = vmatpush.bf16.msra.mxu0 %v349
      %688 = vmatpush.bf16.msra.mxu0 %v345
      %689 = vmatpush.bf16.msra.mxu0 %v341
      %690 = vmatpush.bf16.msra.mxu0 %v337
      %691 = vmatpush.bf16.msra.mxu0 %v333
      %692 = vmatpush.bf16.msra.mxu0 %v329
      %693 = vmatpush.bf16.msra.mxu0 %v325
      %694 = vmatmul.bf16.gmra.mxu0 %v670
      %v695 = vpop.f32.mrf.mxu0
      %v696 = vadd.f32 0.0, %v695
      %v697 = vpop.f32.mrf.mxu0
      %698 = vdwg.mxu0
      %699 = vmatpush.bf16.msra.mxu0 %v354
      %700 = vmatpush.bf16.msra.mxu0 %v350
      %701 = vmatpush.bf16.msra.mxu0 %v346
      %702 = vmatpush.bf16.msra.mxu0 %v342
      %703 = vmatpush.bf16.msra.mxu0 %v338
      %704 = vmatpush.bf16.msra.mxu0 %v334
      %705 = vmatpush.bf16.msra.mxu0 %v330
      %706 = vmatpush.bf16.msra.mxu0 %v326
      %707 = vmatmul.bf16.gmra.mxu0 %v670
      %v708 = vpop.f32.mrf.mxu0
      %v709 = vadd.f32 0.0, %v708
      %v710 = vpop.f32.mrf.mxu0
      %711 = vdwg.mxu0
      %712 = vmatpush.bf16.msra.mxu0 %v355
      %713 = vmatpush.bf16.msra.mxu0 %v351
      %714 = vmatpush.bf16.msra.mxu0 %v347
      %715 = vmatpush.bf16.msra.mxu0 %v343
      %716 = vmatpush.bf16.msra.mxu0 %v339
      %717 = vmatpush.bf16.msra.mxu0 %v335
      %718 = vmatpush.bf16.msra.mxu0 %v331
      %719 = vmatpush.bf16.msra.mxu0 %v327
      %720 = vmatmul.bf16.gmra.mxu0 %v670
      %v721 = vpop.f32.mrf.mxu0
      %v722 = vadd.f32 0.0, %v721
      %v723 = vpop.f32.mrf.mxu0
      %724 = vdwg.mxu0
      %v729 = vrot.slane %v683, 6
      %v730 = vrot.slane %v696, 6
      %v731 = vrot.slane %v709, 6
      %v732 = vrot.slane %v722, 6
      %v737 = vadd.f32 %v662, %v729
      %v738 = vadd.f32 %v663, %v730
      %v739 = vadd.f32 %v664, %v731
      %v740 = vadd.f32 %v665, %v732
      %v741 = vxor.u32 %v737, 2147483648
      %v742 = vmul.f32 %v741, 1.442695
      %v743 = vpow.pop %v742
      %v744 = vadd.f32 %v743, 1.0
      %v745 = vrcp.pop %v744
      %v746 = vmul.f32 %v744, %v745
      %v747 = vsub.f32 1.0, %v746
      %v748 = vmul.f32 %v745, %v747
      %v749 = vadd.f32 %v745, %v748
      %vm750 = vweird.f32 %v744
      %vm751 = vweird.f32 %v745
      %vm752 = vmor %vm750, %vm751
      %v753 = vsel %vm752, %v745, %v749
      %v754 = vand.u32 2147483647, %v744
      %vm755 = vcmp.eq.f32.partialorder %v754, 8.507059e+37
      %v756 = vand.u32 %v744, 2147483648
      %v757 = vor.u32 1.1754944e-38, %v756
      %v758 = vsel %vm755, %v757, %v753
      %v759 = vmul.f32 1.0, %v758
      %v760 = vxor.u32 %v738, 2147483648
      %v761 = vmul.f32 %v760, 1.442695
      %v762 = vpow.pop %v761
      %v763 = vadd.f32 %v762, 1.0
      %v764 = vrcp.pop %v763
      %v765 = vmul.f32 %v763, %v764
      %v766 = vsub.f32 1.0, %v765
      %v767 = vmul.f32 %v764, %v766
      %v768 = vadd.f32 %v764, %v767
      %vm769 = vweird.f32 %v763
      %vm770 = vweird.f32 %v764
      %vm771 = vmor %vm769, %vm770
      %v772 = vsel %vm771, %v764, %v768
      %v773 = vand.u32 2147483647, %v763
      %vm774 = vcmp.eq.f32.partialorder %v773, 8.507059e+37
      %v775 = vand.u32 %v763, 2147483648
      %v776 = vor.u32 1.1754944e-38, %v775
      %v777 = vsel %vm774, %v776, %v772
      %v778 = vmul.f32 1.0, %v777
      %v779 = vtanh.pop %v739
      %v780 = vxor.u32 %v740, 2147483648
      %v781 = vmul.f32 %v780, 1.442695
      %v782 = vpow.pop %v781
      %v783 = vadd.f32 %v782, 1.0
      %v784 = vrcp.pop %v783
      %v785 = vmul.f32 %v783, %v784
      %v786 = vsub.f32 1.0, %v785
      %v787 = vmul.f32 %v784, %v786
      %v788 = vadd.f32 %v784, %v787
      %vm789 = vweird.f32 %v783
      %vm790 = vweird.f32 %v784
      %vm791 = vmor %vm789, %vm790
      %v792 = vsel %vm791, %v784, %v788
      %v793 = vand.u32 2147483647, %v783
      %vm794 = vcmp.eq.f32.partialorder %v793, 8.507059e+37
      %v795 = vand.u32 %v783, 2147483648
      %v796 = vor.u32 1.1754944e-38, %v795
      %v797 = vsel %vm794, %v796, %v792
      %v798 = vmul.f32 1.0, %v797
      %v800 = vrot.slane %v651, 7
      %v802 = vmul.f32 %v778, %v800
      %v803 = vmul.f32 %v759, %v779
      %v804 = vadd.f32 %v802, %v803
      %v805 = vtanh.pop %v804
      %v806 = vmul.f32 %v798, %v805
      %v807 = vpack.c.bf16 %v806, %v806
      %vm808 = vcmask 1041409
      %vm809 = vsmask.f32 1280
      %vm810 = vmand %vm808, %vm809
      %v811 = vld [vmem:[%s175] sm:$0x2]
      %v812 = vsel %vm810, %v807, %v811
      %813 = vst [vmem:[%s175] sm:$0x2] %v812
      %v814 = vld [vmem:[%s168] sm:$0x22]
      %v815 = vld [vmem:[%s168 + $0x8] sm:$0x22]
      %v816 = vunpack.c.l.bf16 %v814
      %v817 = vunpack.c.h.bf16 %v814
      %v818 = vunpack.c.l.bf16 %v815
      %v819 = vunpack.c.h.bf16 %v815
      %v821 = vunpack.c.l.b16 %v807
      %v822 = vpack.c.b16 %v821, %v821
      %v823 = vrot.slane %v822, 1
      %825 = vmatpush.bf16.msra.mxu0 %v352
      %826 = vmatpush.bf16.msra.mxu0 %v348
      %827 = vmatpush.bf16.msra.mxu0 %v344
      %828 = vmatpush.bf16.msra.mxu0 %v340
      %829 = vmatpush.bf16.msra.mxu0 %v336
      %830 = vmatpush.bf16.msra.mxu0 %v332
      %831 = vmatpush.bf16.msra.mxu0 %v328
      %832 = vmatpush.bf16.msra.mxu0 %v324
      %833 = vmatmul.bf16.gmra.mxu0 %v823
      %v834 = vpop.f32.mrf.mxu0
      %v835 = vadd.f32 0.0, %v834
      %v836 = vpop.f32.mrf.mxu0
      %837 = vdwg.mxu0
      %838 = vmatpush.bf16.msra.mxu0 %v353
      %839 = vmatpush.bf16.msra.mxu0 %v349
      %840 = vmatpush.bf16.msra.mxu0 %v345
      %841 = vmatpush.bf16.msra.mxu0 %v341
      %842 = vmatpush.bf16.msra.mxu0 %v337
      %843 = vmatpush.bf16.msra.mxu0 %v333
      %844 = vmatpush.bf16.msra.mxu0 %v329
      %845 = vmatpush.bf16.msra.mxu0 %v325
      %846 = vmatmul.bf16.gmra.mxu0 %v823
      %v847 = vpop.f32.mrf.mxu0
      %v848 = vadd.f32 0.0, %v847
      %v849 = vpop.f32.mrf.mxu0
      %850 = vdwg.mxu0
      %851 = vmatpush.bf16.msra.mxu0 %v354
      %852 = vmatpush.bf16.msra.mxu0 %v350
      %853 = vmatpush.bf16.msra.mxu0 %v346
      %854 = vmatpush.bf16.msra.mxu0 %v342
      %855 = vmatpush.bf16.msra.mxu0 %v338
      %856 = vmatpush.bf16.msra.mxu0 %v334
      %857 = vmatpush.bf16.msra.mxu0 %v330
      %858 = vmatpush.bf16.msra.mxu0 %v326
      %859 = vmatmul.bf16.gmra.mxu0 %v823
      %v860 = vpop.f32.mrf.mxu0
      %v861 = vadd.f32 0.0, %v860
      %v862 = vpop.f32.mrf.mxu0
      %863 = vdwg.mxu0
      %864 = vmatpush.bf16.msra.mxu0 %v355
      %865 = vmatpush.bf16.msra.mxu0 %v351
      %866 = vmatpush.bf16.msra.mxu0 %v347
      %867 = vmatpush.bf16.msra.mxu0 %v343
      %868 = vmatpush.bf16.msra.mxu0 %v339
      %869 = vmatpush.bf16.msra.mxu0 %v335
      %870 = vmatpush.bf16.msra.mxu0 %v331
      %871 = vmatpush.bf16.msra.mxu0 %v327
      %872 = vmatmul.bf16.gmra.mxu0 %v823
      %v873 = vpop.f32.mrf.mxu0
      %v874 = vadd.f32 0.0, %v873
      %v875 = vpop.f32.mrf.mxu0
      %876 = vdwg.mxu0
      %v881 = vrot.slane %v835, 5
      %v882 = vrot.slane %v848, 5
      %v883 = vrot.slane %v861, 5
      %v884 = vrot.slane %v874, 5
      %v889 = vadd.f32 %v816, %v881
      %v890 = vadd.f32 %v817, %v882
      %v891 = vadd.f32 %v818, %v883
      %v892 = vadd.f32 %v819, %v884
      %v893 = vxor.u32 %v889, 2147483648
      %v894 = vmul.f32 %v893, 1.442695
      %v895 = vpow.pop %v894
      %v896 = vadd.f32 %v895, 1.0
      %v897 = vrcp.pop %v896
      %v898 = vmul.f32 %v896, %v897
      %v899 = vsub.f32 1.0, %v898
      %v900 = vmul.f32 %v897, %v899
      %v901 = vadd.f32 %v897, %v900
      %vm902 = vweird.f32 %v896
      %vm903 = vweird.f32 %v897
      %vm904 = vmor %vm902, %vm903
      %v905 = vsel %vm904, %v897, %v901
      %v906 = vand.u32 2147483647, %v896
      %vm907 = vcmp.eq.f32.partialorder %v906, 8.507059e+37
      %v908 = vand.u32 %v896, 2147483648
      %v909 = vor.u32 1.1754944e-38, %v908
      %v910 = vsel %vm907, %v909, %v905
      %v911 = vmul.f32 1.0, %v910
      %v912 = vxor.u32 %v890, 2147483648
      %v913 = vmul.f32 %v912, 1.442695
      %v914 = vpow.pop %v913
      %v915 = vadd.f32 %v914, 1.0
      %v916 = vrcp.pop %v915
      %v917 = vmul.f32 %v915, %v916
      %v918 = vsub.f32 1.0, %v917
      %v919 = vmul.f32 %v916, %v918
      %v920 = vadd.f32 %v916, %v919
      %vm921 = vweird.f32 %v915
      %vm922 = vweird.f32 %v916
      %vm923 = vmor %vm921, %vm922
      %v924 = vsel %vm923, %v916, %v920
      %v925 = vand.u32 2147483647, %v915
      %vm926 = vcmp.eq.f32.partialorder %v925, 8.507059e+37
      %v927 = vand.u32 %v915, 2147483648
      %v928 = vor.u32 1.1754944e-38, %v927
      %v929 = vsel %vm926, %v928, %v924
      %v930 = vmul.f32 1.0, %v929
      %v931 = vtanh.pop %v891
      %v932 = vxor.u32 %v892, 2147483648
      %v933 = vmul.f32 %v932, 1.442695
      %v934 = vpow.pop %v933
      %v935 = vadd.f32 %v934, 1.0
      %v936 = vrcp.pop %v935
      %v937 = vmul.f32 %v935, %v936
      %v938 = vsub.f32 1.0, %v937
      %v939 = vmul.f32 %v936, %v938
      %v940 = vadd.f32 %v936, %v939
      %vm941 = vweird.f32 %v935
      %vm942 = vweird.f32 %v936
      %vm943 = vmor %vm941, %vm942
      %v944 = vsel %vm943, %v936, %v940
      %v945 = vand.u32 2147483647, %v935
      %vm946 = vcmp.eq.f32.partialorder %v945, 8.507059e+37
      %v947 = vand.u32 %v935, 2147483648
      %v948 = vor.u32 1.1754944e-38, %v947
      %v949 = vsel %vm946, %v948, %v944
      %v950 = vmul.f32 1.0, %v949
      %v952 = vrot.slane %v804, 7
      %v954 = vmul.f32 %v930, %v952
      %v955 = vmul.f32 %v911, %v931
      %v956 = vadd.f32 %v954, %v955
      %v957 = vtanh.pop %v956
      %v958 = vmul.f32 %v950, %v957
      %v959 = vpack.c.bf16 %v958, %v958
      %vm960 = vsmask.f32 7942
      %vm961 = vmand %vm808, %vm960
      %v962 = vld [vmem:[%s175] sm:$0x2]
      %v963 = vsel %vm961, %v959, %v962
      %964 = vst [vmem:[%s175] sm:$0x2] %v963
      %v965 = vld [vmem:[%s168] sm:$0x44]
      %v966 = vld [vmem:[%s168 + $0x8] sm:$0x44]
      %v967 = vunpack.c.l.bf16 %v965
      %v968 = vunpack.c.h.bf16 %v965
      %v969 = vunpack.c.l.bf16 %v966
      %v970 = vunpack.c.h.bf16 %v966
      %v972 = vunpack.c.l.b16 %v959
      %v973 = vpack.c.b16 %v972, %v972
      %v975 = vshrl.u32 %v973, 16
      %v977 = vrot.slane %v975, 1
      %979 = vmatpush.bf16.msra.mxu0 %v352
      %980 = vmatpush.bf16.msra.mxu0 %v348
      %981 = vmatpush.bf16.msra.mxu0 %v344
      %982 = vmatpush.bf16.msra.mxu0 %v340
      %983 = vmatpush.bf16.msra.mxu0 %v336
      %984 = vmatpush.bf16.msra.mxu0 %v332
      %985 = vmatpush.bf16.msra.mxu0 %v328
      %986 = vmatpush.bf16.msra.mxu0 %v324
      %987 = vmatmul.bf16.gmra.mxu0 %v977
      %v988 = vpop.f32.mrf.mxu0
      %v989 = vadd.f32 0.0, %v988
      %v990 = vpop.f32.mrf.mxu0
      %991 = vdwg.mxu0
      %992 = vmatpush.bf16.msra.mxu0 %v353
      %993 = vmatpush.bf16.msra.mxu0 %v349
      %994 = vmatpush.bf16.msra.mxu0 %v345
      %995 = vmatpush.bf16.msra.mxu0 %v341
      %996 = vmatpush.bf16.msra.mxu0 %v337
      %997 = vmatpush.bf16.msra.mxu0 %v333
      %998 = vmatpush.bf16.msra.mxu0 %v329
      %999 = vmatpush.bf16.msra.mxu0 %v325
      %1000 = vmatmul.bf16.gmra.mxu0 %v977
      %v1001 = vpop.f32.mrf.mxu0
      %v1002 = vadd.f32 0.0, %v1001
      %v1003 = vpop.f32.mrf.mxu0
      %1004 = vdwg.mxu0
      %1005 = vmatpush.bf16.msra.mxu0 %v354
      %1006 = vmatpush.bf16.msra.mxu0 %v350
      %1007 = vmatpush.bf16.msra.mxu0 %v346
      %1008 = vmatpush.bf16.msra.mxu0 %v342
      %1009 = vmatpush.bf16.msra.mxu0 %v338
      %1010 = vmatpush.bf16.msra.mxu0 %v334
      %1011 = vmatpush.bf16.msra.mxu0 %v330
      %1012 = vmatpush.bf16.msra.mxu0 %v326
      %1013 = vmatmul.bf16.gmra.mxu0 %v977
      %v1014 = vpop.f32.mrf.mxu0
      %v1015 = vadd.f32 0.0, %v1014
      %v1016 = vpop.f32.mrf.mxu0
      %1017 = vdwg.mxu0
      %1018 = vmatpush.bf16.msra.mxu0 %v355
      %1019 = vmatpush.bf16.msra.mxu0 %v351
      %1020 = vmatpush.bf16.msra.mxu0 %v347
      %1021 = vmatpush.bf16.msra.mxu0 %v343
      %1022 = vmatpush.bf16.msra.mxu0 %v339
      %1023 = vmatpush.bf16.msra.mxu0 %v335
      %1024 = vmatpush.bf16.msra.mxu0 %v331
      %1025 = vmatpush.bf16.msra.mxu0 %v327
      %1026 = vmatmul.bf16.gmra.mxu0 %v977
      %v1027 = vpop.f32.mrf.mxu0
      %v1028 = vadd.f32 0.0, %v1027
      %v1029 = vpop.f32.mrf.mxu0
      %1030 = vdwg.mxu0
      %v1035 = vrot.slane %v989, 4
      %v1036 = vrot.slane %v1002, 4
      %v1037 = vrot.slane %v1015, 4
      %v1038 = vrot.slane %v1028, 4
      %v1043 = vadd.f32 %v967, %v1035
      %v1044 = vadd.f32 %v968, %v1036
      %v1045 = vadd.f32 %v969, %v1037
      %v1046 = vadd.f32 %v970, %v1038
      %v1047 = vxor.u32 %v1043, 2147483648
      %v1048 = vmul.f32 %v1047, 1.442695
      %v1049 = vpow.pop %v1048
      %v1050 = vadd.f32 %v1049, 1.0
      %v1051 = vrcp.pop %v1050
      %v1052 = vmul.f32 %v1050, %v1051
      %v1053 = vsub.f32 1.0, %v1052
      %v1054 = vmul.f32 %v1051, %v1053
      %v1055 = vadd.f32 %v1051, %v1054
      %vm1056 = vweird.f32 %v1050
      %vm1057 = vweird.f32 %v1051
      %vm1058 = vmor %vm1056, %vm1057
      %v1059 = vsel %vm1058, %v1051, %v1055
      %v1060 = vand.u32 2147483647, %v1050
      %vm1061 = vcmp.eq.f32.partialorder %v1060, 8.507059e+37
      %v1062 = vand.u32 %v1050, 2147483648
      %v1063 = vor.u32 1.1754944e-38, %v1062
      %v1064 = vsel %vm1061, %v1063, %v1059
      %v1065 = vmul.f32 1.0, %v1064
      %v1066 = vxor.u32 %v1044, 2147483648
      %v1067 = vmul.f32 %v1066, 1.442695
      %v1068 = vpow.pop %v1067
      %v1069 = vadd.f32 %v1068, 1.0
      %v1070 = vrcp.pop %v1069
      %v1071 = vmul.f32 %v1069, %v1070
      %v1072 = vsub.f32 1.0, %v1071
      %v1073 = vmul.f32 %v1070, %v1072
      %v1074 = vadd.f32 %v1070, %v1073
      %vm1075 = vweird.f32 %v1069
      %vm1076 = vweird.f32 %v1070
      %vm1077 = vmor %vm1075, %vm1076
      %v1078 = vsel %vm1077, %v1070, %v1074
      %v1079 = vand.u32 2147483647, %v1069
      %vm1080 = vcmp.eq.f32.partialorder %v1079, 8.507059e+37
      %v1081 = vand.u32 %v1069, 2147483648
      %v1082 = vor.u32 1.1754944e-38, %v1081
      %v1083 = vsel %vm1080, %v1082, %v1078
      %v1084 = vmul.f32 1.0, %v1083
      %v1085 = vtanh.pop %v1045
      %v1086 = vxor.u32 %v1046, 2147483648
      %v1087 = vmul.f32 %v1086, 1.442695
      %v1088 = vpow.pop %v1087
      %v1089 = vadd.f32 %v1088, 1.0
      %v1090 = vrcp.pop %v1089
      %v1091 = vmul.f32 %v1089, %v1090
      %v1092 = vsub.f32 1.0, %v1091
      %v1093 = vmul.f32 %v1090, %v1092
      %v1094 = vadd.f32 %v1090, %v1093
      %vm1095 = vweird.f32 %v1089
      %vm1096 = vweird.f32 %v1090
      %vm1097 = vmor %vm1095, %vm1096
      %v1098 = vsel %vm1097, %v1090, %v1094
      %v1099 = vand.u32 2147483647, %v1089
      %vm1100 = vcmp.eq.f32.partialorder %v1099, 8.507059e+37
      %v1101 = vand.u32 %v1089, 2147483648
      %v1102 = vor.u32 1.1754944e-38, %v1101
      %v1103 = vsel %vm1100, %v1102, %v1098
      %v1104 = vmul.f32 1.0, %v1103
      %v1106 = vrot.slane %v956, 7
      %v1108 = vmul.f32 %v1084, %v1106
      %v1109 = vmul.f32 %v1065, %v1085
      %v1110 = vadd.f32 %v1108, %v1109
      %v1111 = vtanh.pop %v1110
      %v1112 = vmul.f32 %v1104, %v1111
      %v1113 = vpack.c.bf16 %v1112, %v1112
      %vm1114 = vcmask 1042434
      %vm1115 = vsmask.f32 2304
      %vm1116 = vmand %vm1114, %vm1115
      %v1117 = vld [vmem:[%s175] sm:$0x4]
      %v1118 = vsel %vm1116, %v1113, %v1117
      %1119 = vst [vmem:[%s175] sm:$0x4] %v1118
      %v1120 = vld [vmem:[%s168] sm:$0x44]
      %v1121 = vld [vmem:[%s168 + $0x8] sm:$0x44]
      %v1122 = vunpack.c.l.bf16 %v1120
      %v1123 = vunpack.c.h.bf16 %v1120
      %v1124 = vunpack.c.l.bf16 %v1121
      %v1125 = vunpack.c.h.bf16 %v1121
      %v1127 = vunpack.c.l.b16 %v1113
      %v1128 = vpack.c.b16 %v1127, %v1127
      %v1129 = vrot.slane %v1128, 2
      %1131 = vmatpush.bf16.msra.mxu0 %v352
      %1132 = vmatpush.bf16.msra.mxu0 %v348
      %1133 = vmatpush.bf16.msra.mxu0 %v344
      %1134 = vmatpush.bf16.msra.mxu0 %v340
      %1135 = vmatpush.bf16.msra.mxu0 %v336
      %1136 = vmatpush.bf16.msra.mxu0 %v332
      %1137 = vmatpush.bf16.msra.mxu0 %v328
      %1138 = vmatpush.bf16.msra.mxu0 %v324
      %1139 = vmatmul.bf16.gmra.mxu0 %v1129
      %v1140 = vpop.f32.mrf.mxu0
      %v1141 = vadd.f32 0.0, %v1140
      %v1142 = vpop.f32.mrf.mxu0
      %1143 = vdwg.mxu0
      %1144 = vmatpush.bf16.msra.mxu0 %v353
      %1145 = vmatpush.bf16.msra.mxu0 %v349
      %1146 = vmatpush.bf16.msra.mxu0 %v345
      %1147 = vmatpush.bf16.msra.mxu0 %v341
      %1148 = vmatpush.bf16.msra.mxu0 %v337
      %1149 = vmatpush.bf16.msra.mxu0 %v333
      %1150 = vmatpush.bf16.msra.mxu0 %v329
      %1151 = vmatpush.bf16.msra.mxu0 %v325
      %1152 = vmatmul.bf16.gmra.mxu0 %v1129
      %v1153 = vpop.f32.mrf.mxu0
      %v1154 = vadd.f32 0.0, %v1153
      %v1155 = vpop.f32.mrf.mxu0
      %1156 = vdwg.mxu0
      %1157 = vmatpush.bf16.msra.mxu0 %v354
      %1158 = vmatpush.bf16.msra.mxu0 %v350
      %1159 = vmatpush.bf16.msra.mxu0 %v346
      %1160 = vmatpush.bf16.msra.mxu0 %v342
      %1161 = vmatpush.bf16.msra.mxu0 %v338
      %1162 = vmatpush.bf16.msra.mxu0 %v334
      %1163 = vmatpush.bf16.msra.mxu0 %v330
      %1164 = vmatpush.bf16.msra.mxu0 %v326
      %1165 = vmatmul.bf16.gmra.mxu0 %v1129
      %v1166 = vpop.f32.mrf.mxu0
      %v1167 = vadd.f32 0.0, %v1166
      %v1168 = vpop.f32.mrf.mxu0
      %1169 = vdwg.mxu0
      %1170 = vmatpush.bf16.msra.mxu0 %v355
      %1171 = vmatpush.bf16.msra.mxu0 %v351
      %1172 = vmatpush.bf16.msra.mxu0 %v347
      %1173 = vmatpush.bf16.msra.mxu0 %v343
      %1174 = vmatpush.bf16.msra.mxu0 %v339
      %1175 = vmatpush.bf16.msra.mxu0 %v335
      %1176 = vmatpush.bf16.msra.mxu0 %v331
      %1177 = vmatpush.bf16.msra.mxu0 %v327
      %1178 = vmatmul.bf16.gmra.mxu0 %v1129
      %v1179 = vpop.f32.mrf.mxu0
      %v1180 = vadd.f32 0.0, %v1179
      %v1181 = vpop.f32.mrf.mxu0
      %1182 = vdwg.mxu0
      %v1187 = vrot.slane %v1141, 3
      %v1188 = vrot.slane %v1154, 3
      %v1189 = vrot.slane %v1167, 3
      %v1190 = vrot.slane %v1180, 3
      %v1195 = vadd.f32 %v1122, %v1187
      %v1196 = vadd.f32 %v1123, %v1188
      %v1197 = vadd.f32 %v1124, %v1189
      %v1198 = vadd.f32 %v1125, %v1190
      %v1199 = vxor.u32 %v1195, 2147483648
      %v1200 = vmul.f32 %v1199, 1.442695
      %v1201 = vpow.pop %v1200
      %v1202 = vadd.f32 %v1201, 1.0
      %v1203 = vrcp.pop %v1202
      %v1204 = vmul.f32 %v1202, %v1203
      %v1205 = vsub.f32 1.0, %v1204
      %v1206 = vmul.f32 %v1203, %v1205
      %v1207 = vadd.f32 %v1203, %v1206
      %vm1208 = vweird.f32 %v1202
      %vm1209 = vweird.f32 %v1203
      %vm1210 = vmor %vm1208, %vm1209
      %v1211 = vsel %vm1210, %v1203, %v1207
      %v1212 = vand.u32 2147483647, %v1202
      %vm1213 = vcmp.eq.f32.partialorder %v1212, 8.507059e+37
      %v1214 = vand.u32 %v1202, 2147483648
      %v1215 = vor.u32 1.1754944e-38, %v1214
      %v1216 = vsel %vm1213, %v1215, %v1211
      %v1217 = vmul.f32 1.0, %v1216
      %v1218 = vxor.u32 %v1196, 2147483648
      %v1219 = vmul.f32 %v1218, 1.442695
      %v1220 = vpow.pop %v1219
      %v1221 = vadd.f32 %v1220, 1.0
      %v1222 = vrcp.pop %v1221
      %v1223 = vmul.f32 %v1221, %v1222
      %v1224 = vsub.f32 1.0, %v1223
      %v1225 = vmul.f32 %v1222, %v1224
      %v1226 = vadd.f32 %v1222, %v1225
      %vm1227 = vweird.f32 %v1221
      %vm1228 = vweird.f32 %v1222
      %vm1229 = vmor %vm1227, %vm1228
      %v1230 = vsel %vm1229, %v1222, %v1226
      %v1231 = vand.u32 2147483647, %v1221
      %vm1232 = vcmp.eq.f32.partialorder %v1231, 8.507059e+37
      %v1233 = vand.u32 %v1221, 2147483648
      %v1234 = vor.u32 1.1754944e-38, %v1233
      %v1235 = vsel %vm1232, %v1234, %v1230
      %v1236 = vmul.f32 1.0, %v1235
      %v1237 = vtanh.pop %v1197
      %v1238 = vxor.u32 %v1198, 2147483648
      %v1239 = vmul.f32 %v1238, 1.442695
      %v1240 = vpow.pop %v1239
      %v1241 = vadd.f32 %v1240, 1.0
      %v1242 = vrcp.pop %v1241
      %v1243 = vmul.f32 %v1241, %v1242
      %v1244 = vsub.f32 1.0, %v1243
      %v1245 = vmul.f32 %v1242, %v1244
      %v1246 = vadd.f32 %v1242, %v1245
      %vm1247 = vweird.f32 %v1241
      %vm1248 = vweird.f32 %v1242
      %vm1249 = vmor %vm1247, %vm1248
      %v1250 = vsel %vm1249, %v1242, %v1246
      %v1251 = vand.u32 2147483647, %v1241
      %vm1252 = vcmp.eq.f32.partialorder %v1251, 8.507059e+37
      %v1253 = vand.u32 %v1241, 2147483648
      %v1254 = vor.u32 1.1754944e-38, %v1253
      %v1255 = vsel %vm1252, %v1254, %v1250
      %v1256 = vmul.f32 1.0, %v1255
      %v1258 = vrot.slane %v1110, 7
      %v1260 = vmul.f32 %v1236, %v1258
      %v1261 = vmul.f32 %v1217, %v1237
      %v1262 = vadd.f32 %v1260, %v1261
      %v1263 = vtanh.pop %v1262
      %v1264 = vmul.f32 %v1256, %v1263
      %v1265 = vpack.c.bf16 %v1264, %v1264
      %vm1266 = vsmask.f32 7946
      %vm1267 = vmand %vm1114, %vm1266
      %v1268 = vld [vmem:[%s175] sm:$0x4]
      %v1269 = vsel %vm1267, %v1265, %v1268
      %1270 = vst [vmem:[%s175] sm:$0x4] %v1269
      %v1271 = vld [vmem:[%s168] sm:$0x88]
      %v1272 = vld [vmem:[%s168 + $0x8] sm:$0x88]
      %v1273 = vunpack.c.l.bf16 %v1271
      %v1274 = vunpack.c.h.bf16 %v1271
      %v1275 = vunpack.c.l.bf16 %v1272
      %v1276 = vunpack.c.h.bf16 %v1272
      %v1278 = vunpack.c.l.b16 %v1265
      %v1279 = vpack.c.b16 %v1278, %v1278
      %v1281 = vshrl.u32 %v1279, 16
      %v1283 = vrot.slane %v1281, 2
      %1285 = vmatpush.bf16.msra.mxu0 %v352
      %1286 = vmatpush.bf16.msra.mxu0 %v348
      %1287 = vmatpush.bf16.msra.mxu0 %v344
      %1288 = vmatpush.bf16.msra.mxu0 %v340
      %1289 = vmatpush.bf16.msra.mxu0 %v336
      %1290 = vmatpush.bf16.msra.mxu0 %v332
      %1291 = vmatpush.bf16.msra.mxu0 %v328
      %1292 = vmatpush.bf16.msra.mxu0 %v324
      %1293 = vmatmul.bf16.gmra.mxu0 %v1283
      %v1294 = vpop.f32.mrf.mxu0
      %v1295 = vadd.f32 0.0, %v1294
      %v1296 = vpop.f32.mrf.mxu0
      %1297 = vdwg.mxu0
      %1298 = vmatpush.bf16.msra.mxu0 %v353
      %1299 = vmatpush.bf16.msra.mxu0 %v349
      %1300 = vmatpush.bf16.msra.mxu0 %v345
      %1301 = vmatpush.bf16.msra.mxu0 %v341
      %1302 = vmatpush.bf16.msra.mxu0 %v337
      %1303 = vmatpush.bf16.msra.mxu0 %v333
      %1304 = vmatpush.bf16.msra.mxu0 %v329
      %1305 = vmatpush.bf16.msra.mxu0 %v325
      %1306 = vmatmul.bf16.gmra.mxu0 %v1283
      %v1307 = vpop.f32.mrf.mxu0
      %v1308 = vadd.f32 0.0, %v1307
      %v1309 = vpop.f32.mrf.mxu0
      %1310 = vdwg.mxu0
      %1311 = vmatpush.bf16.msra.mxu0 %v354
      %1312 = vmatpush.bf16.msra.mxu0 %v350
      %1313 = vmatpush.bf16.msra.mxu0 %v346
      %1314 = vmatpush.bf16.msra.mxu0 %v342
      %1315 = vmatpush.bf16.msra.mxu0 %v338
      %1316 = vmatpush.bf16.msra.mxu0 %v334
      %1317 = vmatpush.bf16.msra.mxu0 %v330
      %1318 = vmatpush.bf16.msra.mxu0 %v326
      %1319 = vmatmul.bf16.gmra.mxu0 %v1283
      %v1320 = vpop.f32.mrf.mxu0
      %v1321 = vadd.f32 0.0, %v1320
      %v1322 = vpop.f32.mrf.mxu0
      %1323 = vdwg.mxu0
      %1324 = vmatpush.bf16.msra.mxu0 %v355
      %1325 = vmatpush.bf16.msra.mxu0 %v351
      %1326 = vmatpush.bf16.msra.mxu0 %v347
      %1327 = vmatpush.bf16.msra.mxu0 %v343
      %1328 = vmatpush.bf16.msra.mxu0 %v339
      %1329 = vmatpush.bf16.msra.mxu0 %v335
      %1330 = vmatpush.bf16.msra.mxu0 %v331
      %1331 = vmatpush.bf16.msra.mxu0 %v327
      %1332 = vmatmul.bf16.gmra.mxu0 %v1283
      %v1333 = vpop.f32.mrf.mxu0
      %v1334 = vadd.f32 0.0, %v1333
      %v1335 = vpop.f32.mrf.mxu0
      %1336 = vdwg.mxu0
      %v1341 = vrot.slane %v1295, 2
      %v1342 = vrot.slane %v1308, 2
      %v1343 = vrot.slane %v1321, 2
      %v1344 = vrot.slane %v1334, 2
      %v1349 = vadd.f32 %v1273, %v1341
      %v1350 = vadd.f32 %v1274, %v1342
      %v1351 = vadd.f32 %v1275, %v1343
      %v1352 = vadd.f32 %v1276, %v1344
      %v1353 = vxor.u32 %v1349, 2147483648
      %v1354 = vmul.f32 %v1353, 1.442695
      %v1355 = vpow.pop %v1354
      %v1356 = vadd.f32 %v1355, 1.0
      %v1357 = vrcp.pop %v1356
      %v1358 = vmul.f32 %v1356, %v1357
      %v1359 = vsub.f32 1.0, %v1358
      %v1360 = vmul.f32 %v1357, %v1359
      %v1361 = vadd.f32 %v1357, %v1360
      %vm1362 = vweird.f32 %v1356
      %vm1363 = vweird.f32 %v1357
      %vm1364 = vmor %vm1362, %vm1363
      %v1365 = vsel %vm1364, %v1357, %v1361
      %v1366 = vand.u32 2147483647, %v1356
      %vm1367 = vcmp.eq.f32.partialorder %v1366, 8.507059e+37
      %v1368 = vand.u32 %v1356, 2147483648
      %v1369 = vor.u32 1.1754944e-38, %v1368
      %v1370 = vsel %vm1367, %v1369, %v1365
      %v1371 = vmul.f32 1.0, %v1370
      %v1372 = vxor.u32 %v1350, 2147483648
      %v1373 = vmul.f32 %v1372, 1.442695
      %v1374 = vpow.pop %v1373
      %v1375 = vadd.f32 %v1374, 1.0
      %v1376 = vrcp.pop %v1375
      %v1377 = vmul.f32 %v1375, %v1376
      %v1378 = vsub.f32 1.0, %v1377
      %v1379 = vmul.f32 %v1376, %v1378
      %v1380 = vadd.f32 %v1376, %v1379
      %vm1381 = vweird.f32 %v1375
      %vm1382 = vweird.f32 %v1376
      %vm1383 = vmor %vm1381, %vm1382
      %v1384 = vsel %vm1383, %v1376, %v1380
      %v1385 = vand.u32 2147483647, %v1375
      %vm1386 = vcmp.eq.f32.partialorder %v1385, 8.507059e+37
      %v1387 = vand.u32 %v1375, 2147483648
      %v1388 = vor.u32 1.1754944e-38, %v1387
      %v1389 = vsel %vm1386, %v1388, %v1384
      %v1390 = vmul.f32 1.0, %v1389
      %v1391 = vtanh.pop %v1351
      %v1392 = vxor.u32 %v1352, 2147483648
      %v1393 = vmul.f32 %v1392, 1.442695
      %v1394 = vpow.pop %v1393
      %v1395 = vadd.f32 %v1394, 1.0
      %v1396 = vrcp.pop %v1395
      %v1397 = vmul.f32 %v1395, %v1396
      %v1398 = vsub.f32 1.0, %v1397
      %v1399 = vmul.f32 %v1396, %v1398
      %v1400 = vadd.f32 %v1396, %v1399
      %vm1401 = vweird.f32 %v1395
      %vm1402 = vweird.f32 %v1396
      %vm1403 = vmor %vm1401, %vm1402
      %v1404 = vsel %vm1403, %v1396, %v1400
      %v1405 = vand.u32 2147483647, %v1395
      %vm1406 = vcmp.eq.f32.partialorder %v1405, 8.507059e+37
      %v1407 = vand.u32 %v1395, 2147483648
      %v1408 = vor.u32 1.1754944e-38, %v1407
      %v1409 = vsel %vm1406, %v1408, %v1404
      %v1410 = vmul.f32 1.0, %v1409
      %v1412 = vrot.slane %v1262, 7
      %v1414 = vmul.f32 %v1390, %v1412
      %v1415 = vmul.f32 %v1371, %v1391
      %v1416 = vadd.f32 %v1414, %v1415
      %v1417 = vtanh.pop %v1416
      %v1418 = vmul.f32 %v1410, %v1417
      %v1419 = vpack.c.bf16 %v1418, %v1418
      %vm1420 = vcmask 1043459
      %vm1421 = vsmask.f32 3328
      %vm1422 = vmand %vm1420, %vm1421
      %v1423 = vld [vmem:[%s175] sm:$0x8]
      %v1424 = vsel %vm1422, %v1419, %v1423
      %1425 = vst [vmem:[%s175] sm:$0x8] %v1424
      %v1426 = vld [vmem:[%s168] sm:$0x88]
      %v1427 = vld [vmem:[%s168 + $0x8] sm:$0x88]
      %v1428 = vunpack.c.l.bf16 %v1426
      %v1429 = vunpack.c.h.bf16 %v1426
      %v1430 = vunpack.c.l.bf16 %v1427
      %v1431 = vunpack.c.h.bf16 %v1427
      %v1433 = vunpack.c.l.b16 %v1419
      %v1434 = vpack.c.b16 %v1433, %v1433
      %v1435 = vrot.slane %v1434, 3
      %1437 = vmatpush.bf16.msra.mxu0 %v352
      %1438 = vmatpush.bf16.msra.mxu0 %v348
      %1439 = vmatpush.bf16.msra.mxu0 %v344
      %1440 = vmatpush.bf16.msra.mxu0 %v340
      %1441 = vmatpush.bf16.msra.mxu0 %v336
      %1442 = vmatpush.bf16.msra.mxu0 %v332
      %1443 = vmatpush.bf16.msra.mxu0 %v328
      %1444 = vmatpush.bf16.msra.mxu0 %v324
      %1445 = vmatmul.bf16.gmra.mxu0 %v1435
      %v1446 = vpop.f32.mrf.mxu0
      %v1447 = vadd.f32 0.0, %v1446
      %v1448 = vpop.f32.mrf.mxu0
      %1449 = vdwg.mxu0
      %1450 = vmatpush.bf16.msra.mxu0 %v353
      %1451 = vmatpush.bf16.msra.mxu0 %v349
      %1452 = vmatpush.bf16.msra.mxu0 %v345
      %1453 = vmatpush.bf16.msra.mxu0 %v341
      %1454 = vmatpush.bf16.msra.mxu0 %v337
      %1455 = vmatpush.bf16.msra.mxu0 %v333
      %1456 = vmatpush.bf16.msra.mxu0 %v329
      %1457 = vmatpush.bf16.msra.mxu0 %v325
      %1458 = vmatmul.bf16.gmra.mxu0 %v1435
      %v1459 = vpop.f32.mrf.mxu0
      %v1460 = vadd.f32 0.0, %v1459
      %v1461 = vpop.f32.mrf.mxu0
      %1462 = vdwg.mxu0
      %1463 = vmatpush.bf16.msra.mxu0 %v354
      %1464 = vmatpush.bf16.msra.mxu0 %v350
      %1465 = vmatpush.bf16.msra.mxu0 %v346
      %1466 = vmatpush.bf16.msra.mxu0 %v342
      %1467 = vmatpush.bf16.msra.mxu0 %v338
      %1468 = vmatpush.bf16.msra.mxu0 %v334
      %1469 = vmatpush.bf16.msra.mxu0 %v330
      %1470 = vmatpush.bf16.msra.mxu0 %v326
      %1471 = vmatmul.bf16.gmra.mxu0 %v1435
      %v1472 = vpop.f32.mrf.mxu0
      %v1473 = vadd.f32 0.0, %v1472
      %v1474 = vpop.f32.mrf.mxu0
      %1475 = vdwg.mxu0
      %1476 = vmatpush.bf16.msra.mxu0 %v355
      %1477 = vmatpush.bf16.msra.mxu0 %v351
      %1478 = vmatpush.bf16.msra.mxu0 %v347
      %1479 = vmatpush.bf16.msra.mxu0 %v343
      %1480 = vmatpush.bf16.msra.mxu0 %v339
      %1481 = vmatpush.bf16.msra.mxu0 %v335
      %1482 = vmatpush.bf16.msra.mxu0 %v331
      %1483 = vmatpush.bf16.msra.mxu0 %v327
      %1484 = vmatmul.bf16.gmra.mxu0 %v1435
      %v1485 = vpop.f32.mrf.mxu0
      %v1486 = vadd.f32 0.0, %v1485
      %v1487 = vpop.f32.mrf.mxu0
      %1488 = vdwg.mxu0
      %v1493 = vrot.slane %v1447, 1
      %v1494 = vrot.slane %v1460, 1
      %v1495 = vrot.slane %v1473, 1
      %v1496 = vrot.slane %v1486, 1
      %v1501 = vadd.f32 %v1428, %v1493
      %v1502 = vadd.f32 %v1429, %v1494
      %v1503 = vadd.f32 %v1430, %v1495
      %v1504 = vadd.f32 %v1431, %v1496
      %v1505 = vxor.u32 %v1501, 2147483648
      %v1506 = vmul.f32 %v1505, 1.442695
      %v1507 = vpow.pop %v1506
      %v1508 = vadd.f32 %v1507, 1.0
      %v1509 = vrcp.pop %v1508
      %v1510 = vmul.f32 %v1508, %v1509
      %v1511 = vsub.f32 1.0, %v1510
      %v1512 = vmul.f32 %v1509, %v1511
      %v1513 = vadd.f32 %v1509, %v1512
      %vm1514 = vweird.f32 %v1508
      %vm1515 = vweird.f32 %v1509
      %vm1516 = vmor %vm1514, %vm1515
      %v1517 = vsel %vm1516, %v1509, %v1513
      %v1518 = vand.u32 2147483647, %v1508
      %vm1519 = vcmp.eq.f32.partialorder %v1518, 8.507059e+37
      %v1520 = vand.u32 %v1508, 2147483648
      %v1521 = vor.u32 1.1754944e-38, %v1520
      %v1522 = vsel %vm1519, %v1521, %v1517
      %v1523 = vmul.f32 1.0, %v1522
      %v1524 = vxor.u32 %v1502, 2147483648
      %v1525 = vmul.f32 %v1524, 1.442695
      %v1526 = vpow.pop %v1525
      %v1527 = vadd.f32 %v1526, 1.0
      %v1528 = vrcp.pop %v1527
      %v1529 = vmul.f32 %v1527, %v1528
      %v1530 = vsub.f32 1.0, %v1529
      %v1531 = vmul.f32 %v1528, %v1530
      %v1532 = vadd.f32 %v1528, %v1531
      %vm1533 = vweird.f32 %v1527
      %vm1534 = vweird.f32 %v1528
      %vm1535 = vmor %vm1533, %vm1534
      %v1536 = vsel %vm1535, %v1528, %v1532
      %v1537 = vand.u32 2147483647, %v1527
      %vm1538 = vcmp.eq.f32.partialorder %v1537, 8.507059e+37
      %v1539 = vand.u32 %v1527, 2147483648
      %v1540 = vor.u32 1.1754944e-38, %v1539
      %v1541 = vsel %vm1538, %v1540, %v1536
      %v1542 = vmul.f32 1.0, %v1541
      %v1543 = vtanh.pop %v1503
      %v1544 = vxor.u32 %v1504, 2147483648
      %v1545 = vmul.f32 %v1544, 1.442695
      %v1546 = vpow.pop %v1545
      %v1547 = vadd.f32 %v1546, 1.0
      %v1548 = vrcp.pop %v1547
      %v1549 = vmul.f32 %v1547, %v1548
      %v1550 = vsub.f32 1.0, %v1549
      %v1551 = vmul.f32 %v1548, %v1550
      %v1552 = vadd.f32 %v1548, %v1551
      %vm1553 = vweird.f32 %v1547
      %vm1554 = vweird.f32 %v1548
      %vm1555 = vmor %vm1553, %vm1554
      %v1556 = vsel %vm1555, %v1548, %v1552
      %v1557 = vand.u32 2147483647, %v1547
      %vm1558 = vcmp.eq.f32.partialorder %v1557, 8.507059e+37
      %v1559 = vand.u32 %v1547, 2147483648
      %v1560 = vor.u32 1.1754944e-38, %v1559
      %v1561 = vsel %vm1558, %v1560, %v1556
      %v1562 = vmul.f32 1.0, %v1561
      %v1564 = vrot.slane %v1416, 7
      %v1566 = vmul.f32 %v1542, %v1564
      %v1567 = vmul.f32 %v1523, %v1543
      %v1568 = vadd.f32 %v1566, %v1567
      %v1569 = vtanh.pop %v1568
      %v1570 = vmul.f32 %v1562, %v1569
      %v1571 = vpack.c.bf16 %v1570, %v1570
      %vm1572 = vsmask.f32 7950
      %vm1573 = vmand %vm1420, %vm1572
      %v1574 = vld [vmem:[%s175] sm:$0x8]
      %v1575 = vsel %vm1573, %v1571, %v1574
      %1576 = vst [vmem:[%s175] sm:$0x8] %v1575
      %1578 = vst [vmem:[#allocation1] sm:$0xff] %v1571
      %s1579 = scalar_lea.vmem [#allocation1], 3
      %v1580 = vld [vmem:[%s1579] ss:$4 sm:$0xff]
      %v1581 = vshrl.u32 %v1580, 16
      %v1583 = vrot.slane %v1581, 7
      %v1584 = vrot.slane %v1583, 1
      %v1586 = vld [vmem:[#allocation2] sm:$0x1]
      %v1587 = vsel %vm510, %v1584, %v1586
      %1588 = vst [vmem:[#allocation2] sm:$0x1] %v1587
      %1589 = vst [vmem:[#allocation3 - $0x7] sm:$0x80] %v1568
      %p1590 = scmp.lt.s32.totalorder %s17, 1
      %s1591 = scalar_select %p1590, %s17, 1
      %p1592 = scmp.lt.s32.totalorder %s18, 0
      %s1593 = scalar_select %p1592, %s18, 0
      %s1594 = sadd.s32 %s1593, %s1591
      %s1595 = smul.addr %s1594, 4
      %s1596 = scalar_lea.vmem %s2, %s1595
      // Predicated region
      $region33: #{decoder_rnn_forward.4} parent=27 // pred_check
        %p1597 = pneg %p94
      $region34: #{decoder_rnn_forward.4} parent=27 // pred_check_branch
        %1599 = sbr.rel (%p1597) target = $region36
      $region35: #{decoder_rnn_forward.4} parent=27 // pred_region
        _
      $region36: #{decoder_rnn_forward.4} parent=27 // pred_fallthru
        _
    $region28: #{decoder_rnn_forward.4} parent=5 // pred_fallthru
      _
    %p1600 = scmp.le.s32.totalorder 2, %s8
    // Predicated region
    $region37: #{decoder_rnn_forward.4} parent=5 // pred_check
      %p1601 = pneg %p1600
    $region38: #{decoder_rnn_forward.4} parent=5 // pred_check_branch
      %1603 = sbr.rel (%p1601) target = $region40
    $region39: #{decoder_rnn_forward.4} parent=5 // pred_region
      %s1604 = ssub.s32 %s8, 2
      // Predicated region
      $region41: #{decoder_rnn_forward.4} parent=39 // pred_check
        %p1605 = pneg %p100
      $region42: #{decoder_rnn_forward.4} parent=39 // pred_check_branch
        %1607 = sbr.rel (%p1605) target = $region44
      $region43: #{decoder_rnn_forward.4} parent=39 // pred_region
        %p1608 = scmp.lt.s32.totalorder %s19, 1
        %s1609 = scalar_select %p1608, %s19, 1
        %p1610 = scmp.lt.s32.totalorder %s20, 0
        %s1611 = scalar_select %p1610, %s20, 0
        %s1612 = sadd.s32 %s1611, %s1609
        %s1613 = smul.addr %s1612, 4
        %s1614 = scalar_lea.vmem %s2, %s1613
      $region44: #{decoder_rnn_forward.4} parent=39 // pred_fallthru
        _
    $region40: #{decoder_rnn_forward.4} parent=5 // pred_fallthru
      _
  $region6: #{decoder_rnn_forward.4} parent=0 // loop_footer
    %s12 = sadd.s32 1, %s8
  $region7: #{decoder_rnn_forward.4} parent=0 // loop_footer_branch
    %7 = sbr.rel target = $region3
  $region8: #{decoder_rnn_forward.4} parent=0 // loop_exit
    _

</llo_original>
